<compile_context>
chip_gen: v7x
topology: tpu7x:2x2x1
jax: 0.10.0
libtpu: 0.0.40
codegen_flags: <defaults>
</compile_context>

<pallas_src>
import functools

import jax
import jax.numpy as jnp
import numpy as np
from jax.experimental import pallas as pl
from jax.experimental.pallas import tpu as pltpu

HID = 20       # nn.Linear(., 20) hidden width
HPAD = 128     # lane-padded hidden width inside the kernel (zero padding is exact)
LANES = 128    # lane-dense batch tile


def _sigmoid(x):
    # numerically stable, exact sigmoid: 0.5*(tanh(x/2)+1)
    return 0.5 * (jnp.tanh(0.5 * x) + 1.0)


# ---------------------------------------------------------------------------
# Kernel 1: the `Memory` module forward (one-shot).
# ---------------------------------------------------------------------------
def memory_mlp_kernel(t_ref, w1_ref, b1_ref, w2_ref, b2_ref, w3_ref, b3_ref,
                      w4_ref, b4_ref, me_ref):
    t = t_ref[...]                                            # (T, 1)
    h = jnp.tanh(t * w1_ref[...] + b1_ref[...])               # (T, HPAD): K=1 layer as bcast-mul
    h = jnp.tanh(jnp.dot(h, w2_ref[...],
                         preferred_element_type=jnp.float32) + b2_ref[...])
    h = jnp.tanh(jnp.dot(h, w3_ref[...],
                         preferred_element_type=jnp.float32) + b3_ref[...])
    z = jnp.sum(h * w4_ref[...], axis=1, keepdims=True) + b4_ref[...]   # (T, 1)
    me_ref[...] = _sigmoid(z)


# ---------------------------------------------------------------------------
# Kernel 2: blocked Euler integrator with the memory integral.
#   grid = (batch_tiles, time_blocks); one grid step = 8 Euler units.
#   unit u (u = 0..T-2): diff[u] = f(sol[u]); sol[u+1] = sol[u] + dt*f(sol[u])
#   integral at unit u:   dt * sum_{k<=u} I[k] * me[T-1-u+k]
#     old part (k < 8*ts): one MXU matmul  band(8,K) @ I_buf(K,b)
#     new part (k >= 8*ts, <=8 terms): VPU rows with the last-8 dt*me values.
# ---------------------------------------------------------------------------
def sir_block_kernel(params_ref,                 # SMEM (3,): [beta, gamma, dt]
                     band_ref,                   # VMEM (8, K_hist): banded dt*me for this block
                     tail_ref,                   # VMEM (8, b): row p = dt*me[T-8+p] (pre-bcast)
                     y0_ref,                     # VMEM (3, b): rows [S0; I0; R0]
                     solS_ref, solI_ref, solR_ref,
                     dS_ref, dI_ref, dR_ref,     # VMEM (8, b) output blocks for this time block
                     I_buf,                      # VMEM scratch (K_hist, b): I history (fixed rows)
                     carS, carI, carR,           # VMEM scratch (1, b): carried state
                     *, T):
    ts = pl.program_id(1)                        # time-block index (serial, "arbitrary")
    beta = params_ref[0]
    gamma = params_ref[1]
    dt = params_ref[2]
    b = solS_ref.shape[1]

    @pl.when(ts == 0)
    def _init():
        # History rows >= the current unit index must be exactly zero for the old-part matmul.
        I_buf[...] = jnp.zeros_like(I_buf)
        carS[...] = y0_ref[0:1, :]
        carI[...] = y0_ref[1:2, :]
        carR[...] = y0_ref[2:3, :]

    # ---- old-history contribution for the 8 units of this block: one MXU matmul ----
    # band[r, k] = dt*me[k - 8*ts + T-1 - r] (zero outside [0,T));  I_buf[k] = I[k] for k < 8*ts
    old = jnp.dot(band_ref[...], I_buf[...],
                  preferred_element_type=jnp.float32)          # (8, b)
    old_rows = [old[r:r + 1, :] for r in range(8)]

    tail = tail_ref[...]                                       # (8, b): row p = dt*me[T-8+p]
    tail_rows = [tail[p:p + 1, :] for p in range(8)]

    S = carS[...]
    I = carI[...]
    R = carR[...]

    zero_row = jnp.zeros((1, b), jnp.float32)
    solS_rows = [S]                    # sol block row 0 = carried state sol[8*ts]
    solI_rows = [I]
    solR_rows = [R]
    dS_rows, dI_rows, dR_rows = [], [], []
    I_loc = [I]                        # block-local I values (stay in registers)

    for r in range(8):                 # fully unrolled: unit u = 8*ts + r
        # intra-block ("new") part of the integral: <= r+1 VPU row FMAs
        new = zero_row
        for j in range(r + 1):
            new = new + I_loc[j] * tail_rows[7 - r + j]
        integro = old_rows[r] + new

        SI = S * I
        dSdt = -beta * SI + integro
        dIdt = beta * SI - gamma * I
        dRdt = gamma * I - integro

        # Padded units (u >= T-1) must leave their diff rows at zero (diff[T-1] == 0).
        valid = (8 * ts + r) < (T - 1)
        dS_rows.append(jnp.where(valid, dSdt, zero_row))
        dI_rows.append(jnp.where(valid, dIdt, zero_row))
        dR_rows.append(jnp.where(valid, dRdt, zero_row))

        # Euler step
        S = S + dSdt * dt
        I = I + dIdt * dt
        R = R + dRdt * dt
        if r < 7:
            solS_rows.append(S)
            solI_rows.append(I)
            solR_rows.append(R)
            I_loc.append(I)

    # carry state into the next time block (sol[8*ts + 8])
    carS[...] = S
    carI[...] = I
    carR[...] = R

    # ---- one aligned, unmasked (8, b) store per array per block (vreg-assembled tiles) ----
    solS_tile = jnp.concatenate(solS_rows, axis=0)
    solI_tile = jnp.concatenate(solI_rows, axis=0)
    solR_tile = jnp.concatenate(solR_rows, axis=0)
    solS_ref[...] = solS_tile
    solI_ref[...] = solI_tile
    solR_ref[...] = solR_tile
    dS_ref[...] = jnp.concatenate(dS_rows, axis=0)
    dI_ref[...] = jnp.concatenate(dI_rows, axis=0)
    dR_ref[...] = jnp.concatenate(dR_rows, axis=0)

    # append this block's 8 I rows to the history (aligned 8-row store, fixed positions)
    off = pl.multiple_of(ts * 8, 8)
    I_buf[pl.ds(off, 8), :] = solI_tile


# ---------------------------------------------------------------------------
# Parameter init / padding helpers.
# ---------------------------------------------------------------------------
def init_memory_params(key):
    """Deterministic init of Memory: Linear(1,20) -> Linear(20,20) x2 -> Linear(20,1)."""
    ks = jax.random.split(key, 8)

    def lin(kw, kb, fan_in, fan_out):
        bound = 1.0 / np.sqrt(fan_in)
        w = jax.random.uniform(kw, (fan_in, fan_out), jnp.float32, -bound, bound)
        b = jax.random.uniform(kb, (1, fan_out), jnp.float32, -bound, bound)
        return w, b

    w1, b1 = lin(ks[0], ks[1], 1, HID)
    w2, b2 = lin(ks[2], ks[3], HID, HID)
    w3, b3 = lin(ks[4], ks[5], HID, HID)
    w4, b4 = lin(ks[6], ks[7], HID, 1)
    return (w1, b1, w2, b2, w3, b3, w4, b4)


def _pad_params(params):
    """Zero-pad hidden dim 20 -> 128 lanes (mathematically exact through tanh/sigmoid)."""
    w1, b1, w2, b2, w3, b3, w4, b4 = params
    w1p = jnp.zeros((1, HPAD), jnp.float32).at[:, :HID].set(w1)
    b1p = jnp.zeros((1, HPAD), jnp.float32).at[:, :HID].set(b1)
    w2p = jnp.zeros((HPAD, HPAD), jnp.float32).at[:HID, :HID].set(w2)
    b2p = jnp.zeros((1, HPAD), jnp.float32).at[:, :HID].set(b2)
    w3p = jnp.zeros((HPAD, HPAD), jnp.float32).at[:HID, :HID].set(w3)
    b3p = jnp.zeros((1, HPAD), jnp.float32).at[:, :HID].set(b3)
    w4p = jnp.zeros((1, HPAD), jnp.float32).at[:, :HID].set(w4[:, 0].reshape(1, HID))
    b4p = b4.reshape(1, 1)
    return (w1p, b1p, w2p, b2p, w3p, b3p, w4p, b4p)


def _vmem_limit_bytes(K_hist, b):
    # per grid step: I_buf scratch + double-buffered band block + double-buffered
    # (8,b) input/output blocks + carries + slack.  Never clamp below the estimate.
    words = (K_hist * b                # I_buf
             + 2 * 8 * K_hist          # band block (x2)
             + (2 * 8 + 2 * 8) * b     # me_tail, y0 (x2, padded rows)
             + 6 * 2 * 8 * b           # six output blocks (x2)
             + 3 * 8 * b               # carries (padded)
             + 8 * 8 * b)              # temporaries
    est = 4 * words
    return int(min(max(2 * est, 16 << 20), 60 << 20))


# ---------------------------------------------------------------------------
# Forward wrapper (PyTorch semantics: t (T,1), y (B,1,3)).
# ---------------------------------------------------------------------------
@jax.jit
def model_forward(t, y, beta, gamma, params):
    T = t.shape[0]
    B = y.shape[0]
    t32 = t.astype(jnp.float32)
    # dt = t[0] - t[1] as in the reference (assumes a uniform, descending time grid).
    dt = t32[0, 0] - t32[1, 0]

    w1p, b1p, w2p, b2p, w3p, b3p, w4p, b4p = _pad_params(params)
    vmem = pl.BlockSpec(memory_space=pltpu.MemorySpace.VMEM)

    # --- Memory module forward: one-shot Pallas kernel ---
    me = pl.pallas_call(
        memory_mlp_kernel,
        out_shape=jax.ShapeDtypeStruct((T, 1), jnp.float32),
        in_specs=[vmem] * 9,
        out_specs=vmem,
    )(t32, w1p, b1p, w2p, b2p, w3p, b3p, w4p, b4p)

    # dt-prescaled memory kernel (broadcast / dt multiply hoisted out of the kernel).
    me_flat = dt * me[:, 0]                                   # (T,)

    n_tb = pl.cdiv(T, 8)                # number of 8-step time blocks
    K_out = 8 * n_tb                    # padded output rows
    K_hist = 128 * pl.cdiv(K_out, 128)  # padded history / contraction length (MXU-friendly)

    # Banded LHS for the old-history MXU matmul, streamed (8, K_hist) per time block:
    #   band[ts, r, k] = dt*me[k - 8*ts + T-1 - r], zero outside [0, T).
    ts_idx = jnp.arange(n_tb)[:, None, None]
    r_idx = jnp.arange(8)[None, :, None]
    k_idx = jnp.arange(K_hist)[None, None, :]
    idx = k_idx - 8 * ts_idx + (T - 1) - r_idx
    band = jnp.where((idx >= 0) & (idx < T),
                     me_flat[jnp.clip(idx, 0, T - 1)], 0.0).astype(jnp.float32)

    # Last-8 dt*me values (intra-block correction), pre-broadcast to the lane tile.
    b_tile = LANES
    p_idx = jnp.arange(8) + (T - 8)
    tail_vals = jnp.where(p_idx >= 0, me_flat[jnp.clip(p_idx, 0, T - 1)], 0.0)
    me_tail = jnp.broadcast_to(tail_vals[:, None], (8, b_tile)).astype(jnp.float32)

    # Lane-dense, zero-padded batch (padded lanes carry exact zeros, sliced off below).
    B_pad = b_tile * pl.cdiv(B, b_tile)
    y0 = jnp.zeros((3, B_pad), jnp.float32).at[:, :B].set(y[:, 0, :].T.astype(jnp.float32))
    nb = B_pad // b_tile
    # TODO(synk): on v7x (2 TensorCores) prefer nb >= 2 (pad B further or use b_tile=64).

    scal = jnp.stack([beta.astype(jnp.float32), gamma.astype(jnp.float32), dt])

    kernel = functools.partial(sir_block_kernel, T=T)
    outs = pl.pallas_call(
        kernel,
        out_shape=[jax.ShapeDtypeStruct((K_out, B_pad), jnp.float32)] * 6,
        grid=(nb, n_tb),
        in_specs=[
            pl.BlockSpec(memory_space=pltpu.MemorySpace.SMEM),      # [beta, gamma, dt]
            pl.BlockSpec((None, 8, K_hist), lambda b, s: (s, 0, 0)),  # banded dt*me slab
            pl.BlockSpec((8, b_tile), lambda b, s: (0, 0)),         # dt*me tail (resident)
            pl.BlockSpec((3, b_tile), lambda b, s: (0, b)),         # y0 batch tile
        ],
        out_specs=[pl.BlockSpec((8, b_tile), lambda b, s: (s, b))] * 6,
        scratch_shapes=[
            pltpu.VMEM((K_hist, b_tile), jnp.float32),              # I history (fixed rows)
            pltpu.VMEM((1, b_tile), jnp.float32),                   # carried S
            pltpu.VMEM((1, b_tile), jnp.float32),                   # carried I
            pltpu.VMEM((1, b_tile), jnp.float32),                   # carried R
        ],
        compiler_params=pltpu.CompilerParams(
            dimension_semantics=("parallel", "arbitrary"),
            vmem_limit_bytes=_vmem_limit_bytes(K_hist, b_tile)),
    )(scal, band, me_tail, y0)

    solS, solI, solR, dS, dI, dR = outs
    solution = jnp.stack([solS[:T, :B], solI[:T, :B], solR[:T, :B]], axis=-1)   # (T, B, 3)
    diff = jnp.stack([dS[:T, :B], dI[:T, :B], dR[:T, :B]], axis=-1)             # (T, B, 3)
    return solution, diff, me


# ---------------------------------------------------------------------------
# Pure-JAX/numpy reference mirroring the PyTorch forward line by line.
# ---------------------------------------------------------------------------
def forward_ref(t, y, beta, gamma, params):
    w1, b1, w2, b2, w3, b3, w4, b4 = params

    def mlp(x):
        h = jnp.tanh(x @ w1 + b1)
        h = jnp.tanh(h @ w2 + b2)
        h = jnp.tanh(h @ w3 + b3)
        return jax.nn.sigmoid(h @ w4 + b4)

    dt = t[0] - t[1]
    me = mlp(t)                                # (T, 1)  <- the Memory module forward
    y = jnp.transpose(y, (1, 0, 2))            # (1, B, 3)
    solution = y
    T, B = t.shape[0], y.shape[1]
    diff = np.zeros((T, B, 3), np.float32)
    for ii in range(1, T):
        I_hist = solution[:, :, 1]             # (ii, B)
        integro = (I_hist * me[-ii:] * dt).sum(0).reshape(1, B, 1)
        last = solution[-1:, :, :]
        S_, I_, R_ = last[..., 0:1], last[..., 1:2], last[..., 2:3]
        dSdt = -beta * S_ * I_ + integro
        dIdt = beta * S_ * I_ - gamma * I_
        dRdt = gamma * I_ - integro
        f = jnp.concatenate([dSdt, dIdt, dRdt], axis=2)
        diff[ii - 1] = np.asarray(f[0])
        y = y + f * dt
        solution = jnp.concatenate([solution, y], axis=0)
    return np.asarray(me), np.asarray(solution), diff


if __name__ == "__main__":
    key = jax.random.PRNGKey(0)
    k_y, k_w = jax.random.split(key, 2)

    T, B = 20, 4
    # time grid as in the training script (already flipped / decreasing), shape (T, 1)
    t = jnp.linspace(1.0, 0.0, T, dtype=jnp.float32).reshape(T, 1)
    y = jax.random.uniform(k_y, (B, 1, 3), jnp.float32, minval=0.0, maxval=1.0)
    beta = jnp.asarray(0.2, jnp.float32)
    gamma = jnp.asarray(0.2, jnp.float32)
    params = init_memory_params(k_w)

    solution, diff, me = model_forward(t, y, beta, gamma, params)
    jax.block_until_ready((solution, diff, me))

    me_ref, sol_ref, diff_ref = forward_ref(t, y, beta, gamma, params)
    np.testing.assert_allclose(np.asarray(me), me_ref, rtol=2e-3, atol=2e-3)
    np.testing.assert_allclose(np.asarray(solution), sol_ref, rtol=2e-3, atol=2e-3)
    np.testing.assert_allclose(np.asarray(diff), diff_ref, rtol=2e-3, atol=2e-3)
    print("KERNEL_OK")
</pallas_src>

<mosaic_0001>
module attributes {stable_mosaic.version = 11 : i64} {
  func.func @memory_mlp_kernel(%arg0: memref<20x1xf32, #tpu.memory_space<vmem>>, %arg1: memref<1x128xf32, #tpu.memory_space<vmem>>, %arg2: memref<1x128xf32, #tpu.memory_space<vmem>>, %arg3: memref<128x128xf32, #tpu.memory_space<vmem>>, %arg4: memref<1x128xf32, #tpu.memory_space<vmem>>, %arg5: memref<128x128xf32, #tpu.memory_space<vmem>>, %arg6: memref<1x128xf32, #tpu.memory_space<vmem>>, %arg7: memref<1x128xf32, #tpu.memory_space<vmem>>, %arg8: memref<1x1xf32, #tpu.memory_space<vmem>>, %arg9: memref<20x1xf32, #tpu.memory_space<vmem>>) attributes {dimension_semantics = [], scalar_prefetch = 0 : i64, scratch_operands = 0 : i64, tpu.core_type = #tpu.core_type<tc>} {
    %c0 = arith.constant 0 : index
    %c0_0 = arith.constant 0 : index
    %0 = vector.load %arg0[%c0, %c0_0] : memref<20x1xf32, #tpu.memory_space<vmem>>, vector<20x1xf32>
    %c0_1 = arith.constant 0 : index
    %c0_2 = arith.constant 0 : index
    %1 = vector.load %arg1[%c0_1, %c0_2] : memref<1x128xf32, #tpu.memory_space<vmem>>, vector<1x128xf32>
    %2 = vector.broadcast %0 : vector<20x1xf32> to vector<20x128xf32>
    %3 = vector.broadcast %1 : vector<1x128xf32> to vector<20x128xf32>
    %4 = arith.mulf %2, %3 : vector<20x128xf32>
    %c0_3 = arith.constant 0 : index
    %c0_4 = arith.constant 0 : index
    %5 = vector.load %arg2[%c0_3, %c0_4] : memref<1x128xf32, #tpu.memory_space<vmem>>, vector<1x128xf32>
    %6 = vector.broadcast %5 : vector<1x128xf32> to vector<20x128xf32>
    %7 = arith.addf %4, %6 : vector<20x128xf32>
    %8 = math.tanh %7 : vector<20x128xf32>
    %c0_5 = arith.constant 0 : index
    %c0_6 = arith.constant 0 : index
    %9 = vector.load %arg3[%c0_5, %c0_6] : memref<128x128xf32, #tpu.memory_space<vmem>>, vector<128x128xf32>
    %cst = arith.constant dense<0.000000e+00> : vector<20x128xf32>
    %10 = tpu.matmul %8, %9, %cst {dimension_numbers = #tpu.dot_dimension_numbers<[1], [0], [0], [1], [0, 0, 1, 1], [], []>} : vector<20x128xf32>, vector<128x128xf32>, vector<20x128xf32> -> vector<20x128xf32>
    %c0_7 = arith.constant 0 : index
    %c0_8 = arith.constant 0 : index
    %11 = vector.load %arg4[%c0_7, %c0_8] : memref<1x128xf32, #tpu.memory_space<vmem>>, vector<1x128xf32>
    %12 = vector.broadcast %11 : vector<1x128xf32> to vector<20x128xf32>
    %13 = arith.addf %10, %12 : vector<20x128xf32>
    %14 = math.tanh %13 : vector<20x128xf32>
    %c0_9 = arith.constant 0 : index
    %c0_10 = arith.constant 0 : index
    %15 = vector.load %arg5[%c0_9, %c0_10] : memref<128x128xf32, #tpu.memory_space<vmem>>, vector<128x128xf32>
    %cst_11 = arith.constant dense<0.000000e+00> : vector<20x128xf32>
    %16 = tpu.matmul %14, %15, %cst_11 {dimension_numbers = #tpu.dot_dimension_numbers<[1], [0], [0], [1], [0, 0, 1, 1], [], []>} : vector<20x128xf32>, vector<128x128xf32>, vector<20x128xf32> -> vector<20x128xf32>
    %c0_12 = arith.constant 0 : index
    %c0_13 = arith.constant 0 : index
    %17 = vector.load %arg6[%c0_12, %c0_13] : memref<1x128xf32, #tpu.memory_space<vmem>>, vector<1x128xf32>
    %18 = vector.broadcast %17 : vector<1x128xf32> to vector<20x128xf32>
    %19 = arith.addf %16, %18 : vector<20x128xf32>
    %20 = math.tanh %19 : vector<20x128xf32>
    %c0_14 = arith.constant 0 : index
    %c0_15 = arith.constant 0 : index
    %21 = vector.load %arg7[%c0_14, %c0_15] : memref<1x128xf32, #tpu.memory_space<vmem>>, vector<1x128xf32>
    %22 = vector.broadcast %21 : vector<1x128xf32> to vector<20x128xf32>
    %23 = arith.mulf %20, %22 : vector<20x128xf32>
    %cst_16 = arith.constant dense<0.000000e+00> : vector<20xf32>
    %24 = vector.multi_reduction <add>, %23, %cst_16 [1] : vector<20x128xf32> to vector<20xf32>
    %25 = vector.shape_cast %24 : vector<20xf32> to vector<20x1xf32>
    %c0_17 = arith.constant 0 : index
    %c0_18 = arith.constant 0 : index
    %26 = vector.load %arg8[%c0_17, %c0_18] : memref<1x1xf32, #tpu.memory_space<vmem>>, vector<1x1xf32>
    %27 = vector.broadcast %26 : vector<1x1xf32> to vector<20x1xf32>
    %28 = arith.addf %25, %27 : vector<20x1xf32>
    %cst_19 = arith.constant 5.000000e-01 : f32
    %29 = vector.broadcast %cst_19 : f32 to vector<20x1xf32>
    %30 = arith.mulf %29, %28 : vector<20x1xf32>
    %31 = math.tanh %30 : vector<20x1xf32>
    %cst_20 = arith.constant 1.000000e+00 : f32
    %32 = vector.broadcast %cst_20 : f32 to vector<20x1xf32>
    %33 = arith.addf %31, %32 : vector<20x1xf32>
    %cst_21 = arith.constant 5.000000e-01 : f32
    %34 = vector.broadcast %cst_21 : f32 to vector<20x1xf32>
    %35 = arith.mulf %34, %33 : vector<20x1xf32>
    %c0_22 = arith.constant 0 : index
    %c0_23 = arith.constant 0 : index
    %36 = vector.load %arg9[%c0_22, %c0_23] : memref<20x1xf32, #tpu.memory_space<vmem>>, vector<20x1xf32>
    tpu.vector_store %arg9[%c0_22, %c0_23], %35 {strides = array<i32>} : memref<20x1xf32, #tpu.memory_space<vmem>>, vector<20x1xf32>,
    return
  }
}

module attributes {stable_mosaic.version = 11 : i64} {
  func.func @sir_block_kernel(%arg0: i32, %arg1: i32, %arg2: memref<3xf32, #tpu.memory_space<smem>>, %arg3: memref<1x8x128xf32, #tpu.memory_space<vmem>>, %arg4: memref<8x128xf32, #tpu.memory_space<vmem>>, %arg5: memref<3x128xf32, #tpu.memory_space<vmem>>, %arg6: memref<8x128xf32, #tpu.memory_space<vmem>>, %arg7: memref<8x128xf32, #tpu.memory_space<vmem>>, %arg8: memref<8x128xf32, #tpu.memory_space<vmem>>, %arg9: memref<8x128xf32, #tpu.memory_space<vmem>>, %arg10: memref<8x128xf32, #tpu.memory_space<vmem>>, %arg11: memref<8x128xf32, #tpu.memory_space<vmem>>, %arg12: memref<128x128xf32, #tpu.memory_space<vmem>>, %arg13: memref<1x128xf32, #tpu.memory_space<vmem>>, %arg14: memref<1x128xf32, #tpu.memory_space<vmem>>, %arg15: memref<1x128xf32, #tpu.memory_space<vmem>>) attributes {dimension_semantics = [#tpu.dimension_semantics<parallel>, #tpu.dimension_semantics<arbitrary>], iteration_bounds = array<i64: 1, 3>, scalar_prefetch = 0 : i64, scratch_operands = 4 : i64, tpu.core_type = #tpu.core_type<tc>, window_params = [{transform_indices = @transform_0, window_bounds = array<i64: 3>}, {transform_indices = @transform_1, window_bounds = array<i64: 1, 8, 128>}, {pipeline_mode = #tpu.pipeline_mode<synchronous>, transform_indices = @transform_2, window_bounds = array<i64: 8, 128>}, {transform_indices = @transform_3, window_bounds = array<i64: 3, 128>}, {transform_indices = @transform_4, window_bounds = array<i64: 8, 128>}, {transform_indices = @transform_5, window_bounds = array<i64: 8, 128>}, {transform_indices = @transform_6, window_bounds = array<i64: 8, 128>}, {transform_indices = @transform_7, window_bounds = array<i64: 8, 128>}, {transform_indices = @transform_8, window_bounds = array<i64: 8, 128>}, {transform_indices = @transform_9, window_bounds = array<i64: 8, 128>}]} {
    %c0 = arith.constant 0 : index
    %0 = memref.load %arg2[%c0] : memref<3xf32, #tpu.memory_space<smem>>
    %c1 = arith.constant 1 : index
    %1 = memref.load %arg2[%c1] : memref<3xf32, #tpu.memory_space<smem>>
    %c2 = arith.constant 2 : index
    %2 = memref.load %arg2[%c2] : memref<3xf32, #tpu.memory_space<smem>>
    %c0_i32 = arith.constant 0 : i32
    %3 = arith.cmpi eq, %arg1, %c0_i32 : i32
    %4 = arith.extui %3 : i1 to i32
    %c0_i32_0 = arith.constant 0 : i32
    %5 = arith.cmpi ne, %4, %c0_i32_0 : i32
    scf.if %5 {
      %cst_58 = arith.constant 0.000000e+00 : f32
      %354 = vector.broadcast %cst_58 : f32 to vector<128x128xf32>
      %c0_59 = arith.constant 0 : index
      %c0_60 = arith.constant 0 : index
      %355 = vector.load %arg12[%c0_59, %c0_60] : memref<128x128xf32, #tpu.memory_space<vmem>>, vector<128x128xf32>
      tpu.vector_store %arg12[%c0_59, %c0_60], %354 {strides = array<i32>} : memref<128x128xf32, #tpu.memory_space<vmem>>, vector<128x128xf32>,
      %c0_61 = arith.constant 0 : index
      %c0_62 = arith.constant 0 : index
      %356 = vector.load %arg5[%c0_61, %c0_62] : memref<3x128xf32, #tpu.memory_space<vmem>>, vector<1x128xf32>
      %c0_63 = arith.constant 0 : index
      %c0_64 = arith.constant 0 : index
      %357 = vector.load %arg13[%c0_63, %c0_64] : memref<1x128xf32, #tpu.memory_space<vmem>>, vector<1x128xf32>
      tpu.vector_store %arg13[%c0_63, %c0_64], %356 {strides = array<i32>} : memref<1x128xf32, #tpu.memory_space<vmem>>, vector<1x128xf32>,
      %c1_65 = arith.constant 1 : index
      %c0_66 = arith.constant 0 : index
      %358 = vector.load %arg5[%c1_65, %c0_66] : memref<3x128xf32, #tpu.memory_space<vmem>>, vector<1x128xf32>
      %c0_67 = arith.constant 0 : index
      %c0_68 = arith.constant 0 : index
      %359 = vector.load %arg14[%c0_67, %c0_68] : memref<1x128xf32, #tpu.memory_space<vmem>>, vector<1x128xf32>
      tpu.vector_store %arg14[%c0_67, %c0_68], %358 {strides = array<i32>} : memref<1x128xf32, #tpu.memory_space<vmem>>, vector<1x128xf32>,
      %c2_69 = arith.constant 2 : index
      %c0_70 = arith.constant 0 : index
      %360 = vector.load %arg5[%c2_69, %c0_70] : memref<3x128xf32, #tpu.memory_space<vmem>>, vector<1x128xf32>
      %c0_71 = arith.constant 0 : index
      %c0_72 = arith.constant 0 : index
      %361 = vector.load %arg15[%c0_71, %c0_72] : memref<1x128xf32, #tpu.memory_space<vmem>>, vector<1x128xf32>
      tpu.vector_store %arg15[%c0_71, %c0_72], %360 {strides = array<i32>} : memref<1x128xf32, #tpu.memory_space<vmem>>, vector<1x128xf32>,
    } else {
    }
    %c0_1 = arith.constant 0 : index
    %c0_2 = arith.constant 0 : index
    %c0_3 = arith.constant 0 : index
    %6 = vector.load %arg3[%c0_1, %c0_2, %c0_3] : memref<1x8x128xf32, #tpu.memory_space<vmem>>, vector<1x8x128xf32>
    %7 = vector.shape_cast %6 : vector<1x8x128xf32> to vector<8x128xf32>
    %c0_4 = arith.constant 0 : index
    %c0_5 = arith.constant 0 : index
    %8 = vector.load %arg12[%c0_4, %c0_5] : memref<128x128xf32, #tpu.memory_space<vmem>>, vector<128x128xf32>
    %cst = arith.constant dense<0.000000e+00> : vector<8x128xf32>
    %9 = tpu.matmul %7, %8, %cst {dimension_numbers = #tpu.dot_dimension_numbers<[1], [0], [0], [1], [0, 0, 1, 1], [], []>} : vector<8x128xf32>, vector<128x128xf32>, vector<8x128xf32> -> vector<8x128xf32>
    %10 = vector.extract_strided_slice %9 {offsets = [0, 0], sizes = [1, 128], strides = [1, 1]} : vector<8x128xf32> to vector<1x128xf32>
    %11 = vector.extract_strided_slice %9 {offsets = [1, 0], sizes = [1, 128], strides = [1, 1]} : vector<8x128xf32> to vector<1x128xf32>
    %12 = vector.extract_strided_slice %9 {offsets = [2, 0], sizes = [1, 128], strides = [1, 1]} : vector<8x128xf32> to vector<1x128xf32>
    %13 = vector.extract_strided_slice %9 {offsets = [3, 0], sizes = [1, 128], strides = [1, 1]} : vector<8x128xf32> to vector<1x128xf32>
    %14 = vector.extract_strided_slice %9 {offsets = [4, 0], sizes = [1, 128], strides = [1, 1]} : vector<8x128xf32> to vector<1x128xf32>
    %15 = vector.extract_strided_slice %9 {offsets = [5, 0], sizes = [1, 128], strides = [1, 1]} : vector<8x128xf32> to vector<1x128xf32>
    %16 = vector.extract_strided_slice %9 {offsets = [6, 0], sizes = [1, 128], strides = [1, 1]} : vector<8x128xf32> to vector<1x128xf32>
    %17 = vector.extract_strided_slice %9 {offsets = [7, 0], sizes = [1, 128], strides = [1, 1]} : vector<8x128xf32> to vector<1x128xf32>
    %c0_6 = arith.constant 0 : index
    %c0_7 = arith.constant 0 : index
    %18 = vector.load %arg4[%c0_6, %c0_7] : memref<8x128xf32, #tpu.memory_space<vmem>>, vector<8x128xf32>
    %19 = vector.extract_strided_slice %18 {offsets = [0, 0], sizes = [1, 128], strides = [1, 1]} : vector<8x128xf32> to vector<1x128xf32>
    %20 = vector.extract_strided_slice %18 {offsets = [1, 0], sizes = [1, 128], strides = [1, 1]} : vector<8x128xf32> to vector<1x128xf32>
    %21 = vector.extract_strided_slice %18 {offsets = [2, 0], sizes = [1, 128], strides = [1, 1]} : vector<8x128xf32> to vector<1x128xf32>
    %22 = vector.extract_strided_slice %18 {offsets = [3, 0], sizes = [1, 128], strides = [1, 1]} : vector<8x128xf32> to vector<1x128xf32>
    %23 = vector.extract_strided_slice %18 {offsets = [4, 0], sizes = [1, 128], strides = [1, 1]} : vector<8x128xf32> to vector<1x128xf32>
    %24 = vector.extract_strided_slice %18 {offsets = [5, 0], sizes = [1, 128], strides = [1, 1]} : vector<8x128xf32> to vector<1x128xf32>
    %25 = vector.extract_strided_slice %18 {offsets = [6, 0], sizes = [1, 128], strides = [1, 1]} : vector<8x128xf32> to vector<1x128xf32>
    %26 = vector.extract_strided_slice %18 {offsets = [7, 0], sizes = [1, 128], strides = [1, 1]} : vector<8x128xf32> to vector<1x128xf32>
    %c0_8 = arith.constant 0 : index
    %c0_9 = arith.constant 0 : index
    %27 = vector.load %arg13[%c0_8, %c0_9] : memref<1x128xf32, #tpu.memory_space<vmem>>, vector<1x128xf32>
    %c0_10 = arith.constant 0 : index
    %c0_11 = arith.constant 0 : index
    %28 = vector.load %arg14[%c0_10, %c0_11] : memref<1x128xf32, #tpu.memory_space<vmem>>, vector<1x128xf32>
    %c0_12 = arith.constant 0 : index
    %c0_13 = arith.constant 0 : index
    %29 = vector.load %arg15[%c0_12, %c0_13] : memref<1x128xf32, #tpu.memory_space<vmem>>, vector<1x128xf32>
    %cst_14 = arith.constant 0.000000e+00 : f32
    %30 = vector.broadcast %cst_14 : f32 to vector<1x128xf32>
    %31 = arith.mulf %28, %26 : vector<1x128xf32>
    %32 = arith.addf %30, %31 : vector<1x128xf32>
    %33 = arith.addf %10, %32 : vector<1x128xf32>
    %34 = arith.mulf %27, %28 : vector<1x128xf32>
    %cst_15 = arith.constant 0.000000e+00 : f32
    %35 = arith.subf %cst_15, %0 : f32
    %36 = vector.broadcast %35 : f32 to vector<1x128xf32>
    %37 = arith.mulf %36, %34 : vector<1x128xf32>
    %38 = arith.addf %37, %33 : vector<1x128xf32>
    %39 = vector.broadcast %0 : f32 to vector<1x128xf32>
    %40 = arith.mulf %39, %34 : vector<1x128xf32>
    %41 = vector.broadcast %1 : f32 to vector<1x128xf32>
    %42 = arith.mulf %41, %28 : vector<1x128xf32>
    %43 = arith.subf %40, %42 : vector<1x128xf32>
    %44 = vector.broadcast %1 : f32 to vector<1x128xf32>
    %45 = arith.mulf %44, %28 : vector<1x128xf32>
    %46 = arith.subf %45, %33 : vector<1x128xf32>
    %c8_i32 = arith.constant 8 : i32
    %47 = arith.muli %c8_i32, %arg1 : i32
    %c0_i32_16 = arith.constant 0 : i32
    %48 = arith.addi %47, %c0_i32_16 : i32
    %c19_i32 = arith.constant 19 : i32
    %49 = arith.cmpi slt, %48, %c19_i32 : i32
    %50 = arith.select %49, %38, %30 : vector<1x128xf32>
    %51 = arith.select %49, %43, %30 : vector<1x128xf32>
    %52 = arith.select %49, %46, %30 : vector<1x128xf32>
    %53 = vector.broadcast %2 : f32 to vector<1x128xf32>
    %54 = arith.mulf %38, %53 : vector<1x128xf32>
    %55 = arith.addf %27, %54 : vector<1x128xf32>
    %56 = vector.broadcast %2 : f32 to vector<1x128xf32>
    %57 = arith.mulf %43, %56 : vector<1x128xf32>
    %58 = arith.addf %28, %57 : vector<1x128xf32>
    %59 = vector.broadcast %2 : f32 to vector<1x128xf32>
    %60 = arith.mulf %46, %59 : vector<1x128xf32>
    %61 = arith.addf %29, %60 : vector<1x128xf32>
    %62 = arith.mulf %28, %25 : vector<1x128xf32>
    %63 = arith.addf %30, %62 : vector<1x128xf32>
    %64 = arith.mulf %58, %26 : vector<1x128xf32>
    %65 = arith.addf %63, %64 : vector<1x128xf32>
    %66 = arith.addf %11, %65 : vector<1x128xf32>
    %67 = arith.mulf %55, %58 : vector<1x128xf32>
    %cst_17 = arith.constant 0.000000e+00 : f32
    %68 = arith.subf %cst_17, %0 : f32
    %69 = vector.broadcast %68 : f32 to vector<1x128xf32>
    %70 = arith.mulf %69, %67 : vector<1x128xf32>
    %71 = arith.addf %70, %66 : vector<1x128xf32>
    %72 = vector.broadcast %0 : f32 to vector<1x128xf32>
    %73 = arith.mulf %72, %67 : vector<1x128xf32>
    %74 = vector.broadcast %1 : f32 to vector<1x128xf32>
    %75 = arith.mulf %74, %58 : vector<1x128xf32>
    %76 = arith.subf %73, %75 : vector<1x128xf32>
    %77 = vector.broadcast %1 : f32 to vector<1x128xf32>
    %78 = arith.mulf %77, %58 : vector<1x128xf32>
    %79 = arith.subf %78, %66 : vector<1x128xf32>
    %c8_i32_18 = arith.constant 8 : i32
    %80 = arith.muli %c8_i32_18, %arg1 : i32
    %c1_i32 = arith.constant 1 : i32
    %81 = arith.addi %80, %c1_i32 : i32
    %c19_i32_19 = arith.constant 19 : i32
    %82 = arith.cmpi slt, %81, %c19_i32_19 : i32
    %83 = arith.select %82, %71, %30 : vector<1x128xf32>
    %84 = arith.select %82, %76, %30 : vector<1x128xf32>
    %85 = arith.select %82, %79, %30 : vector<1x128xf32>
    %86 = vector.broadcast %2 : f32 to vector<1x128xf32>
    %87 = arith.mulf %71, %86 : vector<1x128xf32>
    %88 = arith.addf %55, %87 : vector<1x128xf32>
    %89 = vector.broadcast %2 : f32 to vector<1x128xf32>
    %90 = arith.mulf %76, %89 : vector<1x128xf32>
    %91 = arith.addf %58, %90 : vector<1x128xf32>
    %92 = vector.broadcast %2 : f32 to vector<1x128xf32>
    %93 = arith.mulf %79, %92 : vector<1x128xf32>
    %94 = arith.addf %61, %93 : vector<1x128xf32>
    %95 = arith.mulf %28, %24 : vector<1x128xf32>
    %96 = arith.addf %30, %95 : vector<1x128xf32>
    %97 = arith.mulf %58, %25 : vector<1x128xf32>
    %98 = arith.addf %96, %97 : vector<1x128xf32>
    %99 = arith.mulf %91, %26 : vector<1x128xf32>
    %100 = arith.addf %98, %99 : vector<1x128xf32>
    %101 = arith.addf %12, %100 : vector<1x128xf32>
    %102 = arith.mulf %88, %91 : vector<1x128xf32>
    %cst_20 = arith.constant 0.000000e+00 : f32
    %103 = arith.subf %cst_20, %0 : f32
    %104 = vector.broadcast %103 : f32 to vector<1x128xf32>
    %105 = arith.mulf %104, %102 : vector<1x128xf32>
    %106 = arith.addf %105, %101 : vector<1x128xf32>
    %107 = vector.broadcast %0 : f32 to vector<1x128xf32>
    %108 = arith.mulf %107, %102 : vector<1x128xf32>
    %109 = vector.broadcast %1 : f32 to vector<1x128xf32>
    %110 = arith.mulf %109, %91 : vector<1x128xf32>
    %111 = arith.subf %108, %110 : vector<1x128xf32>
    %112 = vector.broadcast %1 : f32 to vector<1x128xf32>
    %113 = arith.mulf %112, %91 : vector<1x128xf32>
    %114 = arith.subf %113, %101 : vector<1x128xf32>
    %c8_i32_21 = arith.constant 8 : i32
    %115 = arith.muli %c8_i32_21, %arg1 : i32
    %c2_i32 = arith.constant 2 : i32
    %116 = arith.addi %115, %c2_i32 : i32
    %c19_i32_22 = arith.constant 19 : i32
    %117 = arith.cmpi slt, %116, %c19_i32_22 : i32
    %118 = arith.select %117, %106, %30 : vector<1x128xf32>
    %119 = arith.select %117, %111, %30 : vector<1x128xf32>
    %120 = arith.select %117, %114, %30 : vector<1x128xf32>
    %121 = vector.broadcast %2 : f32 to vector<1x128xf32>
    %122 = arith.mulf %106, %121 : vector<1x128xf32>
    %123 = arith.addf %88, %122 : vector<1x128xf32>
    %124 = vector.broadcast %2 : f32 to vector<1x128xf32>
    %125 = arith.mulf %111, %124 : vector<1x128xf32>
    %126 = arith.addf %91, %125 : vector<1x128xf32>
    %127 = vector.broadcast %2 : f32 to vector<1x128xf32>
    %128 = arith.mulf %114, %127 : vector<1x128xf32>
    %129 = arith.addf %94, %128 : vector<1x128xf32>
    %130 = arith.mulf %28, %23 : vector<1x128xf32>
    %131 = arith.addf %30, %130 : vector<1x128xf32>
    %132 = arith.mulf %58, %24 : vector<1x128xf32>
    %133 = arith.addf %131, %132 : vector<1x128xf32>
    %134 = arith.mulf %91, %25 : vector<1x128xf32>
    %135 = arith.addf %133, %134 : vector<1x128xf32>
    %136 = arith.mulf %126, %26 : vector<1x128xf32>
    %137 = arith.addf %135, %136 : vector<1x128xf32>
    %138 = arith.addf %13, %137 : vector<1x128xf32>
    %139 = arith.mulf %123, %126 : vector<1x128xf32>
    %cst_23 = arith.constant 0.000000e+00 : f32
    %140 = arith.subf %cst_23, %0 : f32
    %141 = vector.broadcast %140 : f32 to vector<1x128xf32>
    %142 = arith.mulf %141, %139 : vector<1x128xf32>
    %143 = arith.addf %142, %138 : vector<1x128xf32>
    %144 = vector.broadcast %0 : f32 to vector<1x128xf32>
    %145 = arith.mulf %144, %139 : vector<1x128xf32>
    %146 = vector.broadcast %1 : f32 to vector<1x128xf32>
    %147 = arith.mulf %146, %126 : vector<1x128xf32>
    %148 = arith.subf %145, %147 : vector<1x128xf32>
    %149 = vector.broadcast %1 : f32 to vector<1x128xf32>
    %150 = arith.mulf %149, %126 : vector<1x128xf32>
    %151 = arith.subf %150, %138 : vector<1x128xf32>
    %c8_i32_24 = arith.constant 8 : i32
    %152 = arith.muli %c8_i32_24, %arg1 : i32
    %c3_i32 = arith.constant 3 : i32
    %153 = arith.addi %152, %c3_i32 : i32
    %c19_i32_25 = arith.constant 19 : i32
    %154 = arith.cmpi slt, %153, %c19_i32_25 : i32
    %155 = arith.select %154, %143, %30 : vector<1x128xf32>
    %156 = arith.select %154, %148, %30 : vector<1x128xf32>
    %157 = arith.select %154, %151, %30 : vector<1x128xf32>
    %158 = vector.broadcast %2 : f32 to vector<1x128xf32>
    %159 = arith.mulf %143, %158 : vector<1x128xf32>
    %160 = arith.addf %123, %159 : vector<1x128xf32>
    %161 = vector.broadcast %2 : f32 to vector<1x128xf32>
    %162 = arith.mulf %148, %161 : vector<1x128xf32>
    %163 = arith.addf %126, %162 : vector<1x128xf32>
    %164 = vector.broadcast %2 : f32 to vector<1x128xf32>
    %165 = arith.mulf %151, %164 : vector<1x128xf32>
    %166 = arith.addf %129, %165 : vector<1x128xf32>
    %167 = arith.mulf %28, %22 : vector<1x128xf32>
    %168 = arith.addf %30, %167 : vector<1x128xf32>
    %169 = arith.mulf %58, %23 : vector<1x128xf32>
    %170 = arith.addf %168, %169 : vector<1x128xf32>
    %171 = arith.mulf %91, %24 : vector<1x128xf32>
    %172 = arith.addf %170, %171 : vector<1x128xf32>
    %173 = arith.mulf %126, %25 : vector<1x128xf32>
    %174 = arith.addf %172, %173 : vector<1x128xf32>
    %175 = arith.mulf %163, %26 : vector<1x128xf32>
    %176 = arith.addf %174, %175 : vector<1x128xf32>
    %177 = arith.addf %14, %176 : vector<1x128xf32>
    %178 = arith.mulf %160, %163 : vector<1x128xf32>
    %cst_26 = arith.constant 0.000000e+00 : f32
    %179 = arith.subf %cst_26, %0 : f32
    %180 = vector.broadcast %179 : f32 to vector<1x128xf32>
    %181 = arith.mulf %180, %178 : vector<1x128xf32>
    %182 = arith.addf %181, %177 : vector<1x128xf32>
    %183 = vector.broadcast %0 : f32 to vector<1x128xf32>
    %184 = arith.mulf %183, %178 : vector<1x128xf32>
    %185 = vector.broadcast %1 : f32 to vector<1x128xf32>
    %186 = arith.mulf %185, %163 : vector<1x128xf32>
    %187 = arith.subf %184, %186 : vector<1x128xf32>
    %188 = vector.broadcast %1 : f32 to vector<1x128xf32>
    %189 = arith.mulf %188, %163 : vector<1x128xf32>
    %190 = arith.subf %189, %177 : vector<1x128xf32>
    %c8_i32_27 = arith.constant 8 : i32
    %191 = arith.muli %c8_i32_27, %arg1 : i32
    %c4_i32 = arith.constant 4 : i32
    %192 = arith.addi %191, %c4_i32 : i32
    %c19_i32_28 = arith.constant 19 : i32
    %193 = arith.cmpi slt, %192, %c19_i32_28 : i32
    %194 = arith.select %193, %182, %30 : vector<1x128xf32>
    %195 = arith.select %193, %187, %30 : vector<1x128xf32>
    %196 = arith.select %193, %190, %30 : vector<1x128xf32>
    %197 = vector.broadcast %2 : f32 to vector<1x128xf32>
    %198 = arith.mulf %182, %197 : vector<1x128xf32>
    %199 = arith.addf %160, %198 : vector<1x128xf32>
    %200 = vector.broadcast %2 : f32 to vector<1x128xf32>
    %201 = arith.mulf %187, %200 : vector<1x128xf32>
    %202 = arith.addf %163, %201 : vector<1x128xf32>
    %203 = vector.broadcast %2 : f32 to vector<1x128xf32>
    %204 = arith.mulf %190, %203 : vector<1x128xf32>
    %205 = arith.addf %166, %204 : vector<1x128xf32>
    %206 = arith.mulf %28, %21 : vector<1x128xf32>
    %207 = arith.addf %30, %206 : vector<1x128xf32>
    %208 = arith.mulf %58, %22 : vector<1x128xf32>
    %209 = arith.addf %207, %208 : vector<1x128xf32>
    %210 = arith.mulf %91, %23 : vector<1x128xf32>
    %211 = arith.addf %209, %210 : vector<1x128xf32>
    %212 = arith.mulf %126, %24 : vector<1x128xf32>
    %213 = arith.addf %211, %212 : vector<1x128xf32>
    %214 = arith.mulf %163, %25 : vector<1x128xf32>
    %215 = arith.addf %213, %214 : vector<1x128xf32>
    %216 = arith.mulf %202, %26 : vector<1x128xf32>
    %217 = arith.addf %215, %216 : vector<1x128xf32>
    %218 = arith.addf %15, %217 : vector<1x128xf32>
    %219 = arith.mulf %199, %202 : vector<1x128xf32>
    %cst_29 = arith.constant 0.000000e+00 : f32
    %220 = arith.subf %cst_29, %0 : f32
    %221 = vector.broadcast %220 : f32 to vector<1x128xf32>
    %222 = arith.mulf %221, %219 : vector<1x128xf32>
    %223 = arith.addf %222, %218 : vector<1x128xf32>
    %224 = vector.broadcast %0 : f32 to vector<1x128xf32>
    %225 = arith.mulf %224, %219 : vector<1x128xf32>
    %226 = vector.broadcast %1 : f32 to vector<1x128xf32>
    %227 = arith.mulf %226, %202 : vector<1x128xf32>
    %228 = arith.subf %225, %227 : vector<1x128xf32>
    %229 = vector.broadcast %1 : f32 to vector<1x128xf32>
    %230 = arith.mulf %229, %202 : vector<1x128xf32>
    %231 = arith.subf %230, %218 : vector<1x128xf32>
    %c8_i32_30 = arith.constant 8 : i32
    %232 = arith.muli %c8_i32_30, %arg1 : i32
    %c5_i32 = arith.constant 5 : i32
    %233 = arith.addi %232, %c5_i32 : i32
    %c19_i32_31 = arith.constant 19 : i32
    %234 = arith.cmpi slt, %233, %c19_i32_31 : i32
    %235 = arith.select %234, %223, %30 : vector<1x128xf32>
    %236 = arith.select %234, %228, %30 : vector<1x128xf32>
    %237 = arith.select %234, %231, %30 : vector<1x128xf32>
    %238 = vector.broadcast %2 : f32 to vector<1x128xf32>
    %239 = arith.mulf %223, %238 : vector<1x128xf32>
    %240 = arith.addf %199, %239 : vector<1x128xf32>
    %241 = vector.broadcast %2 : f32 to vector<1x128xf32>
    %242 = arith.mulf %228, %241 : vector<1x128xf32>
    %243 = arith.addf %202, %242 : vector<1x128xf32>
    %244 = vector.broadcast %2 : f32 to vector<1x128xf32>
    %245 = arith.mulf %231, %244 : vector<1x128xf32>
    %246 = arith.addf %205, %245 : vector<1x128xf32>
    %247 = arith.mulf %28, %20 : vector<1x128xf32>
    %248 = arith.addf %30, %247 : vector<1x128xf32>
    %249 = arith.mulf %58, %21 : vector<1x128xf32>
    %250 = arith.addf %248, %249 : vector<1x128xf32>
    %251 = arith.mulf %91, %22 : vector<1x128xf32>
    %252 = arith.addf %250, %251 : vector<1x128xf32>
    %253 = arith.mulf %126, %23 : vector<1x128xf32>
    %254 = arith.addf %252, %253 : vector<1x128xf32>
    %255 = arith.mulf %163, %24 : vector<1x128xf32>
    %256 = arith.addf %254, %255 : vector<1x128xf32>
    %257 = arith.mulf %202, %25 : vector<1x128xf32>
    %258 = arith.addf %256, %257 : vector<1x128xf32>
    %259 = arith.mulf %243, %26 : vector<1x128xf32>
    %260 = arith.addf %258, %259 : vector<1x128xf32>
    %261 = arith.addf %16, %260 : vector<1x128xf32>
    %262 = arith.mulf %240, %243 : vector<1x128xf32>
    %cst_32 = arith.constant 0.000000e+00 : f32
    %263 = arith.subf %cst_32, %0 : f32
    %264 = vector.broadcast %263 : f32 to vector<1x128xf32>
    %265 = arith.mulf %264, %262 : vector<1x128xf32>
    %266 = arith.addf %265, %261 : vector<1x128xf32>
    %267 = vector.broadcast %0 : f32 to vector<1x128xf32>
    %268 = arith.mulf %267, %262 : vector<1x128xf32>
    %269 = vector.broadcast %1 : f32 to vector<1x128xf32>
    %270 = arith.mulf %269, %243 : vector<1x128xf32>
    %271 = arith.subf %268, %270 : vector<1x128xf32>
    %272 = vector.broadcast %1 : f32 to vector<1x128xf32>
    %273 = arith.mulf %272, %243 : vector<1x128xf32>
    %274 = arith.subf %273, %261 : vector<1x128xf32>
    %c8_i32_33 = arith.constant 8 : i32
    %275 = arith.muli %c8_i32_33, %arg1 : i32
    %c6_i32 = arith.constant 6 : i32
    %276 = arith.addi %275, %c6_i32 : i32
    %c19_i32_34 = arith.constant 19 : i32
    %277 = arith.cmpi slt, %276, %c19_i32_34 : i32
    %278 = arith.select %277, %266, %30 : vector<1x128xf32>
    %279 = arith.select %277, %271, %30 : vector<1x128xf32>
    %280 = arith.select %277, %274, %30 : vector<1x128xf32>
    %281 = vector.broadcast %2 : f32 to vector<1x128xf32>
    %282 = arith.mulf %266, %281 : vector<1x128xf32>
    %283 = arith.addf %240, %282 : vector<1x128xf32>
    %284 = vector.broadcast %2 : f32 to vector<1x128xf32>
    %285 = arith.mulf %271, %284 : vector<1x128xf32>
    %286 = arith.addf %243, %285 : vector<1x128xf32>
    %287 = vector.broadcast %2 : f32 to vector<1x128xf32>
    %288 = arith.mulf %274, %287 : vector<1x128xf32>
    %289 = arith.addf %246, %288 : vector<1x128xf32>
    %290 = arith.mulf %28, %19 : vector<1x128xf32>
    %291 = arith.addf %30, %290 : vector<1x128xf32>
    %292 = arith.mulf %58, %20 : vector<1x128xf32>
    %293 = arith.addf %291, %292 : vector<1x128xf32>
    %294 = arith.mulf %91, %21 : vector<1x128xf32>
    %295 = arith.addf %293, %294 : vector<1x128xf32>
    %296 = arith.mulf %126, %22 : vector<1x128xf32>
    %297 = arith.addf %295, %296 : vector<1x128xf32>
    %298 = arith.mulf %163, %23 : vector<1x128xf32>
    %299 = arith.addf %297, %298 : vector<1x128xf32>
    %300 = arith.mulf %202, %24 : vector<1x128xf32>
    %301 = arith.addf %299, %300 : vector<1x128xf32>
    %302 = arith.mulf %243, %25 : vector<1x128xf32>
    %303 = arith.addf %301, %302 : vector<1x128xf32>
    %304 = arith.mulf %286, %26 : vector<1x128xf32>
    %305 = arith.addf %303, %304 : vector<1x128xf32>
    %306 = arith.addf %17, %305 : vector<1x128xf32>
    %307 = arith.mulf %283, %286 : vector<1x128xf32>
    %cst_35 = arith.constant 0.000000e+00 : f32
    %308 = arith.subf %cst_35, %0 : f32
    %309 = vector.broadcast %308 : f32 to vector<1x128xf32>
    %310 = arith.mulf %309, %307 : vector<1x128xf32>
    %311 = arith.addf %310, %306 : vector<1x128xf32>
    %312 = vector.broadcast %0 : f32 to vector<1x128xf32>
    %313 = arith.mulf %312, %307 : vector<1x128xf32>
    %314 = vector.broadcast %1 : f32 to vector<1x128xf32>
    %315 = arith.mulf %314, %286 : vector<1x128xf32>
    %316 = arith.subf %313, %315 : vector<1x128xf32>
    %317 = vector.broadcast %1 : f32 to vector<1x128xf32>
    %318 = arith.mulf %317, %286 : vector<1x128xf32>
    %319 = arith.subf %318, %306 : vector<1x128xf32>
    %c8_i32_36 = arith.constant 8 : i32
    %320 = arith.muli %c8_i32_36, %arg1 : i32
    %c7_i32 = arith.constant 7 : i32
    %321 = arith.addi %320, %c7_i32 : i32
    %c19_i32_37 = arith.constant 19 : i32
    %322 = arith.cmpi slt, %321, %c19_i32_37 : i32
    %323 = arith.select %322, %311, %30 : vector<1x128xf32>
    %324 = arith.select %322, %316, %30 : vector<1x128xf32>
    %325 = arith.select %322, %319, %30 : vector<1x128xf32>
    %326 = vector.broadcast %2 : f32 to vector<1x128xf32>
    %327 = arith.mulf %311, %326 : vector<1x128xf32>
    %328 = arith.addf %283, %327 : vector<1x128xf32>
    %329 = vector.broadcast %2 : f32 to vector<1x128xf32>
    %330 = arith.mulf %316, %329 : vector<1x128xf32>
    %331 = arith.addf %286, %330 : vector<1x128xf32>
    %332 = vector.broadcast %2 : f32 to vector<1x128xf32>
    %333 = arith.mulf %319, %332 : vector<1x128xf32>
    %334 = arith.addf %289, %333 : vector<1x128xf32>
    %c0_38 = arith.constant 0 : index
    %c0_39 = arith.constant 0 : index
    %335 = vector.load %arg13[%c0_38, %c0_39] : memref<1x128xf32, #tpu.memory_space<vmem>>, vector<1x128xf32>
    tpu.vector_store %arg13[%c0_38, %c0_39], %328 {strides = array<i32>} : memref<1x128xf32, #tpu.memory_space<vmem>>, vector<1x128xf32>,
    %c0_40 = arith.constant 0 : index
    %c0_41 = arith.constant 0 : index
    %336 = vector.load %arg14[%c0_40, %c0_41] : memref<1x128xf32, #tpu.memory_space<vmem>>, vector<1x128xf32>
    tpu.vector_store %arg14[%c0_40, %c0_41], %331 {strides = array<i32>} : memref<1x128xf32, #tpu.memory_space<vmem>>, vector<1x128xf32>,
    %c0_42 = arith.constant 0 : index
    %c0_43 = arith.constant 0 : index
    %337 = vector.load %arg15[%c0_42, %c0_43] : memref<1x128xf32, #tpu.memory_space<vmem>>, vector<1x128xf32>
    tpu.vector_store %arg15[%c0_42, %c0_43], %334 {strides = array<i32>} : memref<1x128xf32, #tpu.memory_space<vmem>>, vector<1x128xf32>,
    %338 = tpu.concatenate %27, %55, %88, %123, %160, %199, %240, %283 in 0 : vector<1x128xf32>, vector<1x128xf32>, vector<1x128xf32>, vector<1x128xf32>, vector<1x128xf32>, vector<1x128xf32>, vector<1x128xf32>, vector<1x128xf32> -> vector<8x128xf32>
    %339 = tpu.concatenate %28, %58, %91, %126, %163, %202, %243, %286 in 0 : vector<1x128xf32>, vector<1x128xf32>, vector<1x128xf32>, vector<1x128xf32>, vector<1x128xf32>, vector<1x128xf32>, vector<1x128xf32>, vector<1x128xf32> -> vector<8x128xf32>
    %340 = tpu.concatenate %29, %61, %94, %129, %166, %205, %246, %289 in 0 : vector<1x128xf32>, vector<1x128xf32>, vector<1x128xf32>, vector<1x128xf32>, vector<1x128xf32>, vector<1x128xf32>, vector<1x128xf32>, vector<1x128xf32> -> vector<8x128xf32>
    %c0_44 = arith.constant 0 : index
    %c0_45 = arith.constant 0 : index
    %341 = vector.load %arg6[%c0_44, %c0_45] : memref<8x128xf32, #tpu.memory_space<vmem>>, vector<8x128xf32>
    tpu.vector_store %arg6[%c0_44, %c0_45], %338 {strides = array<i32>} : memref<8x128xf32, #tpu.memory_space<vmem>>, vector<8x128xf32>,
    %c0_46 = arith.constant 0 : index
    %c0_47 = arith.constant 0 : index
    %342 = vector.load %arg7[%c0_46, %c0_47] : memref<8x128xf32, #tpu.memory_space<vmem>>, vector<8x128xf32>
    tpu.vector_store %arg7[%c0_46, %c0_47], %339 {strides = array<i32>} : memref<8x128xf32, #tpu.memory_space<vmem>>, vector<8x128xf32>,
    %c0_48 = arith.constant 0 : index
    %c0_49 = arith.constant 0 : index
    %343 = vector.load %arg8[%c0_48, %c0_49] : memref<8x128xf32, #tpu.memory_space<vmem>>, vector<8x128xf32>
    tpu.vector_store %arg8[%c0_48, %c0_49], %340 {strides = array<i32>} : memref<8x128xf32, #tpu.memory_space<vmem>>, vector<8x128xf32>,
    %344 = tpu.concatenate %50, %83, %118, %155, %194, %235, %278, %323 in 0 : vector<1x128xf32>, vector<1x128xf32>, vector<1x128xf32>, vector<1x128xf32>, vector<1x128xf32>, vector<1x128xf32>, vector<1x128xf32>, vector<1x128xf32> -> vector<8x128xf32>
    %c0_50 = arith.constant 0 : index
    %c0_51 = arith.constant 0 : index
    %345 = vector.load %arg9[%c0_50, %c0_51] : memref<8x128xf32, #tpu.memory_space<vmem>>, vector<8x128xf32>
    tpu.vector_store %arg9[%c0_50, %c0_51], %344 {strides = array<i32>} : memref<8x128xf32, #tpu.memory_space<vmem>>, vector<8x128xf32>,
    %346 = tpu.concatenate %51, %84, %119, %156, %195, %236, %279, %324 in 0 : vector<1x128xf32>, vector<1x128xf32>, vector<1x128xf32>, vector<1x128xf32>, vector<1x128xf32>, vector<1x128xf32>, vector<1x128xf32>, vector<1x128xf32> -> vector<8x128xf32>
    %c0_52 = arith.constant 0 : index
    %c0_53 = arith.constant 0 : index
    %347 = vector.load %arg10[%c0_52, %c0_53] : memref<8x128xf32, #tpu.memory_space<vmem>>, vector<8x128xf32>
    tpu.vector_store %arg10[%c0_52, %c0_53], %346 {strides = array<i32>} : memref<8x128xf32, #tpu.memory_space<vmem>>, vector<8x128xf32>,
    %348 = tpu.concatenate %52, %85, %120, %157, %196, %237, %280, %325 in 0 : vector<1x128xf32>, vector<1x128xf32>, vector<1x128xf32>, vector<1x128xf32>, vector<1x128xf32>, vector<1x128xf32>, vector<1x128xf32>, vector<1x128xf32> -> vector<8x128xf32>
    %c0_54 = arith.constant 0 : index
    %c0_55 = arith.constant 0 : index
    %349 = vector.load %arg11[%c0_54, %c0_55] : memref<8x128xf32, #tpu.memory_space<vmem>>, vector<8x128xf32>
    tpu.vector_store %arg11[%c0_54, %c0_55], %348 {strides = array<i32>} : memref<8x128xf32, #tpu.memory_space<vmem>>, vector<8x128xf32>,
    %c8_i32_56 = arith.constant 8 : i32
    %350 = arith.muli %arg1, %c8_i32_56 : i32
    %351 = tpu.assume_multiple %350, 8 : i32
    %352 = arith.index_cast %351 : i32 to index
    %c0_57 = arith.constant 0 : index
    %353 = vector.load %arg12[%352, %c0_57] : memref<128x128xf32, #tpu.memory_space<vmem>>, vector<8x128xf32>
    tpu.vector_store %arg12[%352, %c0_57], %339 {strides = array<i32>} : memref<128x128xf32, #tpu.memory_space<vmem>>, vector<8x128xf32>,
    return
  }
  func.func @transform_0(%arg0: i32, %arg1: i32) -> i32 {
    %c0_i32 = arith.constant 0 : i32
    %c0_i32_0 = arith.constant 0 : i32
    return %c0_i32 : i32
  }
  func.func @transform_1(%arg0: i32, %arg1: i32) -> (i32, i32, i32) {
    %c0_i32 = arith.constant 0 : i32
    %c0_i32_0 = arith.constant 0 : i32
    %c0_i32_1 = arith.constant 0 : i32
    return %arg1, %c0_i32, %c0_i32_0 : i32, i32, i32
  }
  func.func @transform_2(%arg0: i32, %arg1: i32) -> (i32, i32) {
    %c0_i32 = arith.constant 0 : i32
    %c0_i32_0 = arith.constant 0 : i32
    %c0_i32_1 = arith.constant 0 : i32
    return %c0_i32, %c0_i32_0 : i32, i32
  }
  func.func @transform_3(%arg0: i32, %arg1: i32) -> (i32, i32) {
    %c0_i32 = arith.constant 0 : i32
    %c0_i32_0 = arith.constant 0 : i32
    return %c0_i32, %arg0 : i32, i32
  }
  func.func @transform_4(%arg0: i32, %arg1: i32) -> (i32, i32) {
    %c0_i32 = arith.constant 0 : i32
    return %arg1, %arg0 : i32, i32
  }
  func.func @transform_5(%arg0: i32, %arg1: i32) -> (i32, i32) {
    %c0_i32 = arith.constant 0 : i32
    return %arg1, %arg0 : i32, i32
  }
  func.func @transform_6(%arg0: i32, %arg1: i32) -> (i32, i32) {
    %c0_i32 = arith.constant 0 : i32
    return %arg1, %arg0 : i32, i32
  }
  func.func @transform_7(%arg0: i32, %arg1: i32) -> (i32, i32) {
    %c0_i32 = arith.constant 0 : i32
    return %arg1, %arg0 : i32, i32
  }
  func.func @transform_8(%arg0: i32, %arg1: i32) -> (i32, i32) {
    %c0_i32 = arith.constant 0 : i32
    return %arg1, %arg0 : i32, i32
  }
  func.func @transform_9(%arg0: i32, %arg1: i32) -> (i32, i32) {
    %c0_i32 = arith.constant 0 : i32
    return %arg1, %arg0 : i32, i32
  }
}

</mosaic_0001>

<llo_original>
// kernel: model_forward.2
$region0: #{model_forward.2}
  #allocation0 [shape = 'u32[]', space=smem, size = 0x4, offset = 0x4, fixed_abs, tag = 'smem constant byte address 0x4 - core index']
  #allocation1 [shape = 'u32[144,128]{1,0:T(1,128)}', space=vmem, size = 0x12000, scoped, tag = 'internal scratch']
  #allocation2 [shape = 'f32[1,1]{1,0:T(1,128)S(1)}', space=vmem, size = 0x200, scoped, tag = 'scoped memory for model_forward.2']
  %s0 = inlined_call_operand.vmem [shape: f32[20,1], index: 0, kind: input, shape index: {}]
  %s1 = inlined_call_operand.vmem [shape: f32[1,128], index: 1, kind: input, shape index: {}]
  %s2 = inlined_call_operand.vmem [shape: f32[1,128], index: 2, kind: input, shape index: {}]
  %s3 = inlined_call_operand.vmem [shape: f32[128,128], index: 3, kind: input, shape index: {}]
  %s4 = inlined_call_operand.vmem [shape: f32[1,128], index: 4, kind: input, shape index: {}]
  %s5 = inlined_call_operand.vmem [shape: f32[128,128], index: 5, kind: input, shape index: {}]
  %s6 = inlined_call_operand.vmem [shape: f32[1,128], index: 6, kind: input, shape index: {}]
  %s7 = inlined_call_operand.vmem [shape: f32[1,128], index: 7, kind: input, shape index: {}]
  %s8 = inlined_call_operand.<no memory space> [shape: f32[1,1], index: 8, kind: input, shape index: {}]
  %s9 = inlined_call_operand.vmem [shape: f32[20,1], index: 9, kind: output, shape index: {}]
  %s10 = sld [smem:[#allocation0]]
  $region46: #{model_forward.2} parent=0
    _
  %s12 = ssub.s32 1, %s10
  %s13 = scalar_select 0, %s12, %s10
  %v14 = vstv %s8
  %15 = vst [vmem:[#allocation2] sm:$0x1] %v14
  // Predicated region
  $region2: #{model_forward.2} parent=0 // pred_check
    _
  $region3: #{model_forward.2} parent=0 // pred_check_branch
    %17 = sbr.rel (0) target = $region5
  $region4: #{model_forward.2} parent=0 // pred_region
    _
  $region5: #{model_forward.2} parent=0 // pred_fallthru
    _
  // Predicated region
  $region6: #{model_forward.2} parent=0 // pred_check
    _
  $region7: #{model_forward.2} parent=0 // pred_check_branch
    %19 = sbr.rel (0) target = $region9
  $region8: #{model_forward.2} parent=0 // pred_region
    _
  $region9: #{model_forward.2} parent=0 // pred_fallthru
    _
  // Predicated region
  $region10: #{model_forward.2} parent=0 // pred_check
    _
  $region11: #{model_forward.2} parent=0 // pred_check_branch
    %21 = sbr.rel (0) target = $region13
  $region12: #{model_forward.2} parent=0 // pred_region
    _
  $region13: #{model_forward.2} parent=0 // pred_fallthru
    _
  // Predicated region
  $region14: #{model_forward.2} parent=0 // pred_check
    _
  $region15: #{model_forward.2} parent=0 // pred_check_branch
    %23 = sbr.rel (0) target = $region17
  $region16: #{model_forward.2} parent=0 // pred_region
    _
  $region17: #{model_forward.2} parent=0 // pred_fallthru
    _
  // Predicated region
  $region18: #{model_forward.2} parent=0 // pred_check
    _
  $region19: #{model_forward.2} parent=0 // pred_check_branch
    %25 = sbr.rel (0) target = $region21
  $region20: #{model_forward.2} parent=0 // pred_region
    _
  $region21: #{model_forward.2} parent=0 // pred_fallthru
    _
  // Predicated region
  $region22: #{model_forward.2} parent=0 // pred_check
    _
  $region23: #{model_forward.2} parent=0 // pred_check_branch
    %27 = sbr.rel (0) target = $region25
  $region24: #{model_forward.2} parent=0 // pred_region
    _
  $region25: #{model_forward.2} parent=0 // pred_fallthru
    _
  // Predicated region
  $region26: #{model_forward.2} parent=0 // pred_check
    _
  $region27: #{model_forward.2} parent=0 // pred_check_branch
    %29 = sbr.rel (0) target = $region29
  $region28: #{model_forward.2} parent=0 // pred_region
    _
  $region29: #{model_forward.2} parent=0 // pred_fallthru
    _
  // Predicated region
  $region30: #{model_forward.2} parent=0 // pred_check
    _
  $region31: #{model_forward.2} parent=0 // pred_check_branch
    %31 = sbr.rel (0) target = $region33
  $region32: #{model_forward.2} parent=0 // pred_region
    _
  $region33: #{model_forward.2} parent=0 // pred_fallthru
    _
  // Predicated region
  $region34: #{model_forward.2} parent=0 // pred_check
    _
  $region35: #{model_forward.2} parent=0 // pred_check_branch
    %33 = sbr.rel (0) target = $region37
  $region36: #{model_forward.2} parent=0 // pred_region
    _
  $region37: #{model_forward.2} parent=0 // pred_fallthru
    _
  %v34 = vld [vmem:[%s0] sm:$0xff]
  %v35 = vld [vmem:[%s0 + $0x8] sm:$0xff]
  %v36 = vld [vmem:[%s0 + $0x10] sm:$0xf]
  %v37 = vld [vmem:[%s1] sm:$0x1]
  %39 = vset.pattern.permute.xlu0 0
  %40 = vperm.xlu0 %39, %v34
  %v41 = vpop.permute.xlu0 %40
  %44 = vset.pattern.permute.xlu0 0
  %45 = vperm.xlu0 %44, %v35
  %v46 = vpop.permute.xlu0 %45
  %49 = vset.pattern.permute.xlu0 0
  %50 = vperm.xlu0 %49, %v36
  %v51 = vpop.permute.xlu0 %50
  %v54 = vlaneseq
  %v55 = vshrl.u32 %v54, 7
  %v56 = vsub.s32 0, %v55
  %v57 = vrot.slane %v37, %v56
  %v59 = vmul.f32 %v41, %v57
  %v60 = vmul.f32 %v46, %v57
  %v61 = vmul.f32 %v51, %v57
  %v62 = vld [vmem:[%s2] sm:$0x1]
  %v64 = vlaneseq
  %v65 = vshrl.u32 %v64, 7
  %v66 = vsub.s32 0, %v65
  %v67 = vrot.slane %v62, %v66
  %v69 = vadd.f32 %v59, %v67
  %v70 = vadd.f32 %v60, %v67
  %v71 = vadd.f32 %v61, %v67
  %v72 = vtanh.pop %v69
  %v73 = vtanh.pop %v70
  %v74 = vtanh.pop %v71
  %v75 = vld [vmem:[%s3] sm:$0xff]
  %v76 = vld [vmem:[%s3 + $0x8] sm:$0xff]
  %v77 = vld [vmem:[%s3 + $0x10] sm:$0xff]
  %v78 = vld [vmem:[%s3 + $0x18] sm:$0xff]
  %v79 = vld [vmem:[%s3 + $0x20] sm:$0xff]
  %v80 = vld [vmem:[%s3 + $0x28] sm:$0xff]
  %v81 = vld [vmem:[%s3 + $0x30] sm:$0xff]
  %v82 = vld [vmem:[%s3 + $0x38] sm:$0xff]
  %v83 = vld [vmem:[%s3 + $0x40] sm:$0xff]
  %v84 = vld [vmem:[%s3 + $0x48] sm:$0xff]
  %v85 = vld [vmem:[%s3 + $0x50] sm:$0xff]
  %v86 = vld [vmem:[%s3 + $0x58] sm:$0xff]
  %v87 = vld [vmem:[%s3 + $0x60] sm:$0xff]
  %v88 = vld [vmem:[%s3 + $0x68] sm:$0xff]
  %v89 = vld [vmem:[%s3 + $0x70] sm:$0xff]
  %v90 = vld [vmem:[%s3 + $0x78] sm:$0xff]
  %v91 = vld [vmem:[%s4] sm:$0x1]
  %v93 = vlaneseq
  %v94 = vshrl.u32 %v93, 7
  %v95 = vsub.s32 0, %v94
  %v96 = vrot.slane %v91, %v95
  %98 = vmatprep.subr.mxu0 0.0
  %99 = vmatpush1.msra.mxu0 %v75
  %100 = vmatprep.subr.mxu0 0.0
  %101 = vmatpush1.msra.mxu0 %v76
  %102 = vmatprep.subr.mxu0 0.0
  %103 = vmatpush1.msra.mxu0 %v77
  %104 = vmatprep.subr.mxu0 0.0
  %105 = vmatpush1.msra.mxu0 %v78
  %106 = vmatprep.subr.mxu0 0.0
  %107 = vmatpush1.msra.mxu0 %v79
  %108 = vmatprep.subr.mxu0 0.0
  %109 = vmatpush1.msra.mxu0 %v80
  %110 = vmatprep.subr.mxu0 0.0
  %111 = vmatpush1.msra.mxu0 %v81
  %112 = vmatprep.subr.mxu0 0.0
  %113 = vmatpush1.msra.mxu0 %v82
  %114 = vmatprep.subr.mxu0 0.0
  %115 = vmatpush1.msra.mxu0 %v83
  %116 = vmatprep.subr.mxu0 0.0
  %117 = vmatpush1.msra.mxu0 %v84
  %118 = vmatprep.subr.mxu0 0.0
  %119 = vmatpush1.msra.mxu0 %v85
  %120 = vmatprep.subr.mxu0 0.0
  %121 = vmatpush1.msra.mxu0 %v86
  %122 = vmatprep.subr.mxu0 0.0
  %123 = vmatpush1.msra.mxu0 %v87
  %124 = vmatprep.subr.mxu0 0.0
  %125 = vmatpush1.msra.mxu0 %v88
  %126 = vmatprep.subr.mxu0 0.0
  %127 = vmatpush1.msra.mxu0 %v89
  %128 = vmatprep.subr.mxu0 0.0
  %129 = vmatpush1.msra.mxu0 %v90
  %130 = vmatprep.subr.mxu0 0.0
  %131 = vmatpush1.msra.mxu0 0.0
  %132 = vmatprep.subr.mxu0 0.0
  %133 = vmatpush1.msra.mxu0 0.0
  %134 = vmatprep.subr.mxu0 0.0
  %135 = vmatpush1.msra.mxu0 0.0
  %136 = vmatprep.subr.mxu0 0.0
  %137 = vmatpush1.msra.mxu0 0.0
  %138 = vmatprep.subr.mxu0 0.0
  %139 = vmatpush1.msra.mxu0 0.0
  %140 = vmatprep.subr.mxu0 0.0
  %141 = vmatpush1.msra.mxu0 0.0
  %142 = vmatprep.subr.mxu0 0.0
  %143 = vmatpush1.msra.mxu0 0.0
  %144 = vmatprep.subr.mxu0 0.0
  %145 = vmatpush1.msra.mxu0 0.0
  %146 = vmatprep.subr.mxu0 0.0
  %147 = vmatpush1.msra.mxu0 0.0
  %148 = vmatprep.subr.mxu0 0.0
  %149 = vmatpush1.msra.mxu0 0.0
  %150 = vmatprep.subr.mxu0 0.0
  %151 = vmatpush1.msra.mxu0 0.0
  %152 = vmatprep.subr.mxu0 0.0
  %153 = vmatpush1.msra.mxu0 0.0
  %154 = vmatprep.subr.mxu0 0.0
  %155 = vmatpush1.msra.mxu0 0.0
  %156 = vmatprep.subr.mxu0 0.0
  %157 = vmatpush1.msra.mxu0 0.0
  %158 = vmatprep.subr.mxu0 0.0
  %159 = vmatpush1.msra.mxu0 0.0
  %160 = vmatprep.subr.mxu0 0.0
  %161 = vmatpush1.msra.mxu0 0.0
  %162 = vmatprep.mubr.f32.mxu0 0.0
  %163 = vmatmul.mubr.f32.gmra.mrb[0].mxu0 %v72
  %v164 = vpop.f32.mrb[0].mxu0
  %v165 = vadd.f32 %v96, %v164
  %v166 = vpop.f32.mrb[0].mxu0
  %167 = vmatprep.mubr.f32.mxu0 0.0
  %168 = vmatmul.mubr.f32.gmra.mrb[0].mxu0 %v73
  %v169 = vpop.f32.mrb[0].mxu0
  %v170 = vadd.f32 %v96, %v169
  %v171 = vpop.f32.mrb[0].mxu0
  %172 = vmatprep.mubr.f32.mxu0 0.0
  %173 = vmatmul.mubr.f32.gmra.mrb[0].mxu0 %v74
  %v174 = vpop.f32.mrb[0].mxu0
  %v175 = vadd.f32 %v96, %v174
  %v176 = vpop.f32.mrb[0].mxu0
  %177 = vdwg.mxu0
  %v178 = vtanh.pop %v165
  %v179 = vtanh.pop %v170
  %v180 = vtanh.pop %v175
  %v181 = vld [vmem:[%s5] sm:$0xff]
  %v182 = vld [vmem:[%s5 + $0x8] sm:$0xff]
  %v183 = vld [vmem:[%s5 + $0x10] sm:$0xff]
  %v184 = vld [vmem:[%s5 + $0x18] sm:$0xff]
  %v185 = vld [vmem:[%s5 + $0x20] sm:$0xff]
  %v186 = vld [vmem:[%s5 + $0x28] sm:$0xff]
  %v187 = vld [vmem:[%s5 + $0x30] sm:$0xff]
  %v188 = vld [vmem:[%s5 + $0x38] sm:$0xff]
  %v189 = vld [vmem:[%s5 + $0x40] sm:$0xff]
  %v190 = vld [vmem:[%s5 + $0x48] sm:$0xff]
  %v191 = vld [vmem:[%s5 + $0x50] sm:$0xff]
  %v192 = vld [vmem:[%s5 + $0x58] sm:$0xff]
  %v193 = vld [vmem:[%s5 + $0x60] sm:$0xff]
  %v194 = vld [vmem:[%s5 + $0x68] sm:$0xff]
  %v195 = vld [vmem:[%s5 + $0x70] sm:$0xff]
  %v196 = vld [vmem:[%s5 + $0x78] sm:$0xff]
  %v197 = vld [vmem:[%s6] sm:$0x1]
  %v199 = vlaneseq
  %v200 = vshrl.u32 %v199, 7
  %v201 = vsub.s32 0, %v200
  %v202 = vrot.slane %v197, %v201
  %204 = vmatprep.subr.mxu0 0.0
  %205 = vmatpush1.msra.mxu0 %v181
  %206 = vmatprep.subr.mxu0 0.0
  %207 = vmatpush1.msra.mxu0 %v182
  %208 = vmatprep.subr.mxu0 0.0
  %209 = vmatpush1.msra.mxu0 %v183
  %210 = vmatprep.subr.mxu0 0.0
  %211 = vmatpush1.msra.mxu0 %v184
  %212 = vmatprep.subr.mxu0 0.0
  %213 = vmatpush1.msra.mxu0 %v185
  %214 = vmatprep.subr.mxu0 0.0
  %215 = vmatpush1.msra.mxu0 %v186
  %216 = vmatprep.subr.mxu0 0.0
  %217 = vmatpush1.msra.mxu0 %v187
  %218 = vmatprep.subr.mxu0 0.0
  %219 = vmatpush1.msra.mxu0 %v188
  %220 = vmatprep.subr.mxu0 0.0
  %221 = vmatpush1.msra.mxu0 %v189
  %222 = vmatprep.subr.mxu0 0.0
  %223 = vmatpush1.msra.mxu0 %v190
  %224 = vmatprep.subr.mxu0 0.0
  %225 = vmatpush1.msra.mxu0 %v191
  %226 = vmatprep.subr.mxu0 0.0
  %227 = vmatpush1.msra.mxu0 %v192
  %228 = vmatprep.subr.mxu0 0.0
  %229 = vmatpush1.msra.mxu0 %v193
  %230 = vmatprep.subr.mxu0 0.0
  %231 = vmatpush1.msra.mxu0 %v194
  %232 = vmatprep.subr.mxu0 0.0
  %233 = vmatpush1.msra.mxu0 %v195
  %234 = vmatprep.subr.mxu0 0.0
  %235 = vmatpush1.msra.mxu0 %v196
  %236 = vmatprep.subr.mxu0 0.0
  %237 = vmatpush1.msra.mxu0 0.0
  %238 = vmatprep.subr.mxu0 0.0
  %239 = vmatpush1.msra.mxu0 0.0
  %240 = vmatprep.subr.mxu0 0.0
  %241 = vmatpush1.msra.mxu0 0.0
  %242 = vmatprep.subr.mxu0 0.0
  %243 = vmatpush1.msra.mxu0 0.0
  %244 = vmatprep.subr.mxu0 0.0
  %245 = vmatpush1.msra.mxu0 0.0
  %246 = vmatprep.subr.mxu0 0.0
  %247 = vmatpush1.msra.mxu0 0.0
  %248 = vmatprep.subr.mxu0 0.0
  %249 = vmatpush1.msra.mxu0 0.0
  %250 = vmatprep.subr.mxu0 0.0
  %251 = vmatpush1.msra.mxu0 0.0
  %252 = vmatprep.subr.mxu0 0.0
  %253 = vmatpush1.msra.mxu0 0.0
  %254 = vmatprep.subr.mxu0 0.0
  %255 = vmatpush1.msra.mxu0 0.0
  %256 = vmatprep.subr.mxu0 0.0
  %257 = vmatpush1.msra.mxu0 0.0
  %258 = vmatprep.subr.mxu0 0.0
  %259 = vmatpush1.msra.mxu0 0.0
  %260 = vmatprep.subr.mxu0 0.0
  %261 = vmatpush1.msra.mxu0 0.0
  %262 = vmatprep.subr.mxu0 0.0
  %263 = vmatpush1.msra.mxu0 0.0
  %264 = vmatprep.subr.mxu0 0.0
  %265 = vmatpush1.msra.mxu0 0.0
  %266 = vmatprep.subr.mxu0 0.0
  %267 = vmatpush1.msra.mxu0 0.0
  %268 = vmatprep.mubr.f32.mxu0 0.0
  %269 = vmatmul.mubr.f32.gmra.mrb[0].mxu0 %v178
  %v270 = vpop.f32.mrb[0].mxu0
  %v271 = vadd.f32 %v202, %v270
  %v272 = vpop.f32.mrb[0].mxu0
  %273 = vmatprep.mubr.f32.mxu0 0.0
  %274 = vmatmul.mubr.f32.gmra.mrb[0].mxu0 %v179
  %v275 = vpop.f32.mrb[0].mxu0
  %v276 = vadd.f32 %v202, %v275
  %v277 = vpop.f32.mrb[0].mxu0
  %278 = vmatprep.mubr.f32.mxu0 0.0
  %279 = vmatmul.mubr.f32.gmra.mrb[0].mxu0 %v180
  %v280 = vpop.f32.mrb[0].mxu0
  %v281 = vadd.f32 %v202, %v280
  %v282 = vpop.f32.mrb[0].mxu0
  %283 = vdwg.mxu0
  %v284 = vtanh.pop %v271
  %v285 = vtanh.pop %v276
  %v286 = vtanh.pop %v281
  %v287 = vld [vmem:[%s7] sm:$0x1]
  %v289 = vlaneseq
  %v290 = vshrl.u32 %v289, 7
  %v291 = vsub.s32 0, %v290
  %v292 = vrot.slane %v287, %v291
  %v294 = vmul.f32 %v284, %v292
  %v295 = vmul.f32 %v285, %v292
  %v296 = vmul.f32 %v286, %v292
  %297 = vadd.xlane.f32.xlu0 %v294
  %v298 = vpop.xlane.xlu0 %297
  %299 = vadd.xlane.f32.xlu0 %v295
  %v300 = vpop.xlane.xlu0 %299
  %vm301 = vcmask 1043456
  %v302 = vsel %vm301, %v296, 0.0
  %303 = vadd.xlane.f32.xlu0 %v302
  %v304 = vpop.xlane.xlu0 %303
  %v305 = vld [vmem:[#allocation2] sm:$0x1]
  %v307 = vlaneseq
  %v308 = vshrl.u32 %v307, 7
  %v309 = vsub.s32 0, %v308
  %v310 = vrot.slane %v305, %v309
  %v312 = vadd.f32 %v298, %v310
  %v313 = vadd.f32 %v300, %v310
  %v314 = vadd.f32 %v304, %v310
  %v315 = vmul.f32 %v312, 0.5
  %v316 = vmul.f32 %v313, 0.5
  %v317 = vmul.f32 %v314, 0.5
  %v318 = vtanh.pop %v315
  %v319 = vtanh.pop %v316
  %v320 = vtanh.pop %v317
  %v321 = vadd.f32 %v318, 1.0
  %v322 = vadd.f32 %v319, 1.0
  %v323 = vadd.f32 %v320, 1.0
  %v324 = vmul.f32 %v321, 0.5
  %v325 = vmul.f32 %v322, 0.5
  %v326 = vmul.f32 %v323, 0.5
  %vm327 = vcmask 7168
  %328 = vst.msk [vmem:[%s9] sm:$0xff] %vm327, %v324
  %329 = vst.msk [vmem:[%s9 + $0x8] sm:$0xff] %vm327, %v325
  %vm330 = vcmask 3072
  %331 = vst.msk [vmem:[%s9 + $0x10] sm:$0xf] %vm330, %v326
  // Predicated region
  $region38: #{model_forward.2} parent=0 // pred_check
    _
  $region39: #{model_forward.2} parent=0 // pred_check_branch
    %333 = sbr.rel (0) target = $region41
  $region40: #{model_forward.2} parent=0 // pred_region
    _
  $region41: #{model_forward.2} parent=0 // pred_fallthru
    _
  // Predicated region
  $region42: #{model_forward.2} parent=0 // pred_check
    _
  $region43: #{model_forward.2} parent=0 // pred_check_branch
    %335 = sbr.rel (0) target = $region45
  $region44: #{model_forward.2} parent=0 // pred_region
    _
  $region45: #{model_forward.2} parent=0 // pred_fallthru
    _

// kernel: model_forward.3
$region0: #{model_forward.3}
  #allocation0 [shape = 'u32[]', space=smem, size = 0x4, offset = 0x4, fixed_abs, tag = 'smem constant byte address 0x4 - core index']
  #allocation1 [shape = 'u32[144,128]{1,0:T(1,128)}', space=vmem, size = 0x12000, scoped, tag = 'internal scratch']
  #allocation2 [shape = 'f32[128,128]{1,0:T(8,128)}', space=vmem, size = 0x10000, scoped, tag = 'scratch operand']
  #allocation3 [shape = 'f32[1,128]{1,0:T(1,128)}', space=vmem, size = 0x200, scoped, tag = 'scratch operand']
  #allocation4 [shape = 'f32[1,128]{1,0:T(1,128)}', space=vmem, size = 0x200, scoped, tag = 'scratch operand']
  #allocation5 [shape = 'f32[1,128]{1,0:T(1,128)}', space=vmem, size = 0x200, scoped, tag = 'scratch operand']
  %s0 = inlined_call_operand.vmem [shape: f32[3], index: 0, kind: input, shape index: {}]
  %s1 = inlined_call_operand.vmem [shape: f32[3,8,128], index: 1, kind: input, shape index: {}]
  %s2 = inlined_call_operand.vmem [shape: f32[8,128], index: 2, kind: input, shape index: {}]
  %s3 = inlined_call_operand.vmem [shape: f32[3,128], index: 3, kind: input, shape index: {}]
  %s4 = inlined_call_operand.vmem [shape: f32[24,128], index: 4, kind: output, shape index: {0}]
  %s5 = inlined_call_operand.vmem [shape: f32[24,128], index: 5, kind: output, shape index: {1}]
  %s6 = inlined_call_operand.vmem [shape: f32[24,128], index: 6, kind: output, shape index: {2}]
  %s7 = inlined_call_operand.vmem [shape: f32[24,128], index: 7, kind: output, shape index: {3}]
  %s8 = inlined_call_operand.vmem [shape: f32[24,128], index: 8, kind: output, shape index: {4}]
  %s9 = inlined_call_operand.vmem [shape: f32[24,128], index: 9, kind: output, shape index: {5}]
  %10 = xla_tuple %s4, %s5, %s6, %s7, %s8, %s9
  %s11 = sld [smem:[#allocation0]]
  $region97: #{model_forward.3} parent=0
    _
  %s13 = ssub.s32 1, %s11
  %s14 = scalar_select 0, %s13, %s11
  $region1: #{model_forward.3} parent=0
    #allocation6 [shape = 'u8[512]{0}', space=smem, size = 0x200, scoped, tag = 'input window, operand 0, single buffered']
    #allocation7 [shape = 's32[2]{0}', space=sflag, size = 0x8, scoped, tag = 'scoped memory for model_forward.3']
    %15 = vsyncpa [#allocation7], 0
    loop: start=0, step=1, limit=5
    $region2: #{model_forward.3} parent=1 // loop_pre_header
      _
    $region3: #{model_forward.3} parent=1 // loop_header
      %s17 = sphi 0, %s21
      %p18 = scmp.ge.s32.totalorder %s17, 5
      %s24 = sphi 0, %s36
      %s25 = sphi 0, %s32
      %s26 = sphi 0, %s24
      %s27 = sphi 0, %s25
      %s28 = sphi 0, %s26
      %s29 = sphi 0, %s27
      %s37 = sphi 0, %s37
      %s39 = sphi 0, %s37
      %s40 = sphi 0, %s39
      %s54 = sphi 0, %s40
      %s60 = sphi 0, %s62
      %s63 = sphi 0, %s60
      %s64 = sphi 0, %s63
      %s80 = sphi 0, %s64
      %s84 = sphi 0, %s84
      %s86 = sphi 0, %s84
      %s87 = sphi 0, %s86
      %s101 = sphi 0, %s87
      %s107 = sphi 0, %s109
      %s110 = sphi 0, %s107
      %s111 = sphi 0, %s110
      %s127 = sphi 0, %s111
      %s135 = sphi 0, %s137
      %s138 = sphi 0, %s135
      %s139 = sphi 0, %s138
      %s155 = sphi 0, %s139
      %s163 = sphi 0, %s165
      %s166 = sphi 0, %s163
      %s167 = sphi 0, %s166
      %s183 = sphi 0, %s167
      %s191 = sphi 0, %s193
      %s194 = sphi 0, %s191
      %s195 = sphi 0, %s194
      %s211 = sphi 0, %s195
      %s219 = sphi 0, %s221
      %s222 = sphi 0, %s219
      %s223 = sphi 0, %s222
      %s239 = sphi 0, %s223
      %s247 = sphi 0, %s249
      %s250 = sphi 0, %s247
      %s251 = sphi 0, %s250
      %s267 = sphi 0, %s251
      %s275 = sphi 0, %s277
      %s278 = sphi 0, %s275
      %s279 = sphi 0, %s278
      %s295 = sphi 0, %s279
    $region4: #{model_forward.3} parent=1 // loop_header_branch
      %20 = sbr.rel (%p18) target = $region8
    $region5: #{model_forward.3} parent=1 // loop_body
      %s22 = ssub.s32 %s17, 1
      %s23 = ssub.s32 %s17, 2
      %s30 = sadd.s32 1, %s25
      %p31 = scmp.ge.s32.totalorder %s30, 3
      %s32 = scalar_select %p31, 0, %s30
      %s33 = sadd.s32 1, %s24
      %s34 = scalar_select %p31, %s33, %s24
      %p35 = scmp.ge.s32.totalorder %s34, 1
      %s36 = scalar_select %p35, 0, %s34
      %s38 = sadd.s32 %s37, 1
      %p41 = scmp.eq.s32.totalorder %s17, 2
      %p42 = scmp.ne.s32.totalorder %s37, %s39
      %p43 = scmp.eq.s32.totalorder %s17, 0
      %p44 = por %p42, %p43
      %p45 = scmp.ne.s32.totalorder %s37, %s39
      %p46 = scmp.eq.s32.totalorder %s22, 2
      %p47 = por %p45, %p46
      %p48 = scmp.ne.s32.totalorder %s39, %s40
      %p49 = scmp.eq.s32.totalorder %s22, 0
      %p50 = por %p48, %p49
      %p51 = scmp.ne.s32.totalorder %s39, %s40
      %p52 = scmp.eq.s32.totalorder %s23, 2
      %p53 = por %p51, %p52
      %p55 = scmp.ne.s32.totalorder %s40, %s54
      %p56 = scmp.eq.s32.totalorder %s23, 0
      %p57 = por %p55, %p56
      %s58 = ssub.s32 %s25, %s32
      %p59 = scmp.eq.s32.totalorder %s58, 0
      %s61 = sadd.s32 %s60, 1
      %s62 = scalar_select %p59, %s60, %s61
      %p65 = pneg %p59
      %p66 = scmp.eq.s32.totalorder %s17, 2
      %p67 = por %p65, %p66
      %p68 = scmp.ne.s32.totalorder %s60, %s63
      %p69 = scmp.eq.s32.totalorder %s17, 0
      %p70 = por %p68, %p69
      %p71 = scmp.ne.s32.totalorder %s60, %s63
      %p72 = scmp.eq.s32.totalorder %s22, 2
      %p73 = por %p71, %p72
      %p74 = scmp.ne.s32.totalorder %s63, %s64
      %p75 = scmp.eq.s32.totalorder %s22, 0
      %p76 = por %p74, %p75
      %p77 = scmp.ne.s32.totalorder %s63, %s64
      %p78 = scmp.eq.s32.totalorder %s23, 2
      %p79 = por %p77, %p78
      %p81 = scmp.ne.s32.totalorder %s64, %s80
      %p82 = scmp.eq.s32.totalorder %s23, 0
      %p83 = por %p81, %p82
      %s85 = sadd.s32 %s84, 1
      %p88 = scmp.eq.s32.totalorder %s17, 2
      %p89 = scmp.ne.s32.totalorder %s84, %s86
      %p90 = scmp.eq.s32.totalorder %s17, 0
      %p91 = por %p89, %p90
      %p92 = scmp.ne.s32.totalorder %s84, %s86
      %p93 = scmp.eq.s32.totalorder %s22, 2
      %p94 = por %p92, %p93
      %p95 = scmp.ne.s32.totalorder %s86, %s87
      %p96 = scmp.eq.s32.totalorder %s22, 0
      %p97 = por %p95, %p96
      %p98 = scmp.ne.s32.totalorder %s86, %s87
      %p99 = scmp.eq.s32.totalorder %s23, 2
      %p100 = por %p98, %p99
      %p102 = scmp.ne.s32.totalorder %s87, %s101
      %p103 = scmp.eq.s32.totalorder %s23, 0
      %p104 = por %p102, %p103
      %s105 = ssub.s32 %s24, %s36
      %p106 = scmp.eq.s32.totalorder %s105, 0
      %s108 = sadd.s32 %s107, 1
      %s109 = scalar_select %p106, %s107, %s108
      %p112 = pneg %p106
      %p113 = scmp.eq.s32.totalorder %s17, 2
      %p114 = por %p112, %p113
      %p115 = scmp.ne.s32.totalorder %s107, %s110
      %p116 = scmp.eq.s32.totalorder %s17, 0
      %p117 = por %p115, %p116
      %p118 = scmp.ne.s32.totalorder %s107, %s110
      %p119 = scmp.eq.s32.totalorder %s22, 2
      %p120 = por %p118, %p119
      %p121 = scmp.ne.s32.totalorder %s110, %s111
      %p122 = scmp.eq.s32.totalorder %s22, 0
      %p123 = por %p121, %p122
      %p124 = scmp.ne.s32.totalorder %s110, %s111
      %p125 = scmp.eq.s32.totalorder %s23, 2
      %p126 = por %p124, %p125
      %p128 = scmp.ne.s32.totalorder %s111, %s127
      %p129 = scmp.eq.s32.totalorder %s23, 0
      %p130 = por %p128, %p129
      %s131 = ssub.s32 %s25, %s32
      %s132 = ssub.s32 %s24, %s36
      %s133 = sor.u32 %s131, %s132
      %p134 = scmp.eq.s32.totalorder %s133, 0
      %s136 = sadd.s32 %s135, 1
      %s137 = scalar_select %p134, %s135, %s136
      %p140 = pneg %p134
      %p141 = scmp.eq.s32.totalorder %s17, 2
      %p142 = por %p140, %p141
      %p143 = scmp.ne.s32.totalorder %s135, %s138
      %p144 = scmp.eq.s32.totalorder %s17, 0
      %p145 = por %p143, %p144
      %p146 = scmp.ne.s32.totalorder %s135, %s138
      %p147 = scmp.eq.s32.totalorder %s22, 2
      %p148 = por %p146, %p147
      %p149 = scmp.ne.s32.totalorder %s138, %s139
      %p150 = scmp.eq.s32.totalorder %s22, 0
      %p151 = por %p149, %p150
      %p152 = scmp.ne.s32.totalorder %s138, %s139
      %p153 = scmp.eq.s32.totalorder %s23, 2
      %p154 = por %p152, %p153
      %p156 = scmp.ne.s32.totalorder %s139, %s155
      %p157 = scmp.eq.s32.totalorder %s23, 0
      %p158 = por %p156, %p157
      %s159 = ssub.s32 %s25, %s32
      %s160 = ssub.s32 %s24, %s36
      %s161 = sor.u32 %s159, %s160
      %p162 = scmp.eq.s32.totalorder %s161, 0
      %s164 = sadd.s32 %s163, 1
      %s165 = scalar_select %p162, %s163, %s164
      %p168 = pneg %p162
      %p169 = scmp.eq.s32.totalorder %s17, 2
      %p170 = por %p168, %p169
      %p171 = scmp.ne.s32.totalorder %s163, %s166
      %p172 = scmp.eq.s32.totalorder %s17, 0
      %p173 = por %p171, %p172
      %p174 = scmp.ne.s32.totalorder %s163, %s166
      %p175 = scmp.eq.s32.totalorder %s22, 2
      %p176 = por %p174, %p175
      %p177 = scmp.ne.s32.totalorder %s166, %s167
      %p178 = scmp.eq.s32.totalorder %s22, 0
      %p179 = por %p177, %p178
      %p180 = scmp.ne.s32.totalorder %s166, %s167
      %p181 = scmp.eq.s32.totalorder %s23, 2
      %p182 = por %p180, %p181
      %p184 = scmp.ne.s32.totalorder %s167, %s183
      %p185 = scmp.eq.s32.totalorder %s23, 0
      %p186 = por %p184, %p185
      %s187 = ssub.s32 %s25, %s32
      %s188 = ssub.s32 %s24, %s36
      %s189 = sor.u32 %s187, %s188
      %p190 = scmp.eq.s32.totalorder %s189, 0
      %s192 = sadd.s32 %s191, 1
      %s193 = scalar_select %p190, %s191, %s192
      %p196 = pneg %p190
      %p197 = scmp.eq.s32.totalorder %s17, 2
      %p198 = por %p196, %p197
      %p199 = scmp.ne.s32.totalorder %s191, %s194
      %p200 = scmp.eq.s32.totalorder %s17, 0
      %p201 = por %p199, %p200
      %p202 = scmp.ne.s32.totalorder %s191, %s194
      %p203 = scmp.eq.s32.totalorder %s22, 2
      %p204 = por %p202, %p203
      %p205 = scmp.ne.s32.totalorder %s194, %s195
      %p206 = scmp.eq.s32.totalorder %s22, 0
      %p207 = por %p205, %p206
      %p208 = scmp.ne.s32.totalorder %s194, %s195
      %p209 = scmp.eq.s32.totalorder %s23, 2
      %p210 = por %p208, %p209
      %p212 = scmp.ne.s32.totalorder %s195, %s211
      %p213 = scmp.eq.s32.totalorder %s23, 0
      %p214 = por %p212, %p213
      %s215 = ssub.s32 %s25, %s32
      %s216 = ssub.s32 %s24, %s36
      %s217 = sor.u32 %s215, %s216
      %p218 = scmp.eq.s32.totalorder %s217, 0
      %s220 = sadd.s32 %s219, 1
      %s221 = scalar_select %p218, %s219, %s220
      %p224 = pneg %p218
      %p225 = scmp.eq.s32.totalorder %s17, 2
      %p226 = por %p224, %p225
      %p227 = scmp.ne.s32.totalorder %s219, %s222
      %p228 = scmp.eq.s32.totalorder %s17, 0
      %p229 = por %p227, %p228
      %p230 = scmp.ne.s32.totalorder %s219, %s222
      %p231 = scmp.eq.s32.totalorder %s22, 2
      %p232 = por %p230, %p231
      %p233 = scmp.ne.s32.totalorder %s222, %s223
      %p234 = scmp.eq.s32.totalorder %s22, 0
      %p235 = por %p233, %p234
      %p236 = scmp.ne.s32.totalorder %s222, %s223
      %p237 = scmp.eq.s32.totalorder %s23, 2
      %p238 = por %p236, %p237
      %p240 = scmp.ne.s32.totalorder %s223, %s239
      %p241 = scmp.eq.s32.totalorder %s23, 0
      %p242 = por %p240, %p241
      %s243 = ssub.s32 %s25, %s32
      %s244 = ssub.s32 %s24, %s36
      %s245 = sor.u32 %s243, %s244
      %p246 = scmp.eq.s32.totalorder %s245, 0
      %s248 = sadd.s32 %s247, 1
      %s249 = scalar_select %p246, %s247, %s248
      %p252 = pneg %p246
      %p253 = scmp.eq.s32.totalorder %s17, 2
      %p254 = por %p252, %p253
      %p255 = scmp.ne.s32.totalorder %s247, %s250
      %p256 = scmp.eq.s32.totalorder %s17, 0
      %p257 = por %p255, %p256
      %p258 = scmp.ne.s32.totalorder %s247, %s250
      %p259 = scmp.eq.s32.totalorder %s22, 2
      %p260 = por %p258, %p259
      %p261 = scmp.ne.s32.totalorder %s250, %s251
      %p262 = scmp.eq.s32.totalorder %s22, 0
      %p263 = por %p261, %p262
      %p264 = scmp.ne.s32.totalorder %s250, %s251
      %p265 = scmp.eq.s32.totalorder %s23, 2
      %p266 = por %p264, %p265
      %p268 = scmp.ne.s32.totalorder %s251, %s267
      %p269 = scmp.eq.s32.totalorder %s23, 0
      %p270 = por %p268, %p269
      %s271 = ssub.s32 %s25, %s32
      %s272 = ssub.s32 %s24, %s36
      %s273 = sor.u32 %s271, %s272
      %p274 = scmp.eq.s32.totalorder %s273, 0
      %s276 = sadd.s32 %s275, 1
      %s277 = scalar_select %p274, %s275, %s276
      %p280 = pneg %p274
      %p281 = scmp.eq.s32.totalorder %s17, 2
      %p282 = por %p280, %p281
      %p283 = scmp.ne.s32.totalorder %s275, %s278
      %p284 = scmp.eq.s32.totalorder %s17, 0
      %p285 = por %p283, %p284
      %p286 = scmp.ne.s32.totalorder %s275, %s278
      %p287 = scmp.eq.s32.totalorder %s22, 2
      %p288 = por %p286, %p287
      %p289 = scmp.ne.s32.totalorder %s278, %s279
      %p290 = scmp.eq.s32.totalorder %s22, 0
      %p291 = por %p289, %p290
      %p292 = scmp.ne.s32.totalorder %s278, %s279
      %p293 = scmp.eq.s32.totalorder %s23, 2
      %p294 = por %p292, %p293
      %p296 = scmp.ne.s32.totalorder %s279, %s295
      %p297 = scmp.eq.s32.totalorder %s23, 0
      %p298 = por %p296, %p297
      %p299 = scmp.le.s32.totalorder 1, %s17
      %p300 = scmp.lt.s32.totalorder %s17, 4
      %p301 = pnand %p299, %p300
      %p302 = pneg %p301
      // Predicated region
      $region9: #{model_forward.3} parent=5 // pred_check
        _
      $region10: #{model_forward.3} parent=5 // pred_check_branch
        %304 = sbr.rel (%p301) target = $region12
      $region11: #{model_forward.3} parent=5 // pred_region
        %s305 = ssub.s32 %s17, 1
        // Predicated region
        $region13: #{model_forward.3} parent=11 // pred_check
          %p306 = pneg %p50
        $region14: #{model_forward.3} parent=11 // pred_check_branch
          %308 = sbr.rel (%p306) target = $region16
        $region15: #{model_forward.3} parent=11 // pred_region
          %s310 = ssub.s32 16, 16
          %311 = vsyncadd [#allocation7], %s310
          %s313 = sshll.u32 %s0, 4
          %s314 = int_to_ptr.vmem [resolvable:$true] %s313
          %316 = dma.vmem_to_smem %s314, 16, [#allocation6], [#allocation7]
        $region16: #{model_forward.3} parent=11 // pred_fallthru
          _
        // Predicated region
        $region17: #{model_forward.3} parent=11 // pred_check
          %p317 = pneg %p97
        $region18: #{model_forward.3} parent=11 // pred_check_branch
          %319 = sbr.rel (%p317) target = $region20
        $region19: #{model_forward.3} parent=11 // pred_region
          _
        $region20: #{model_forward.3} parent=11 // pred_fallthru
          _
        // Predicated region
        $region21: #{model_forward.3} parent=11 // pred_check
          %p320 = pneg %p123
        $region22: #{model_forward.3} parent=11 // pred_check_branch
          %322 = sbr.rel (%p320) target = $region24
        $region23: #{model_forward.3} parent=11 // pred_region
          %p323 = scmp.lt.s32.totalorder %s26, 0
          %s324 = scalar_select %p323, %s26, 0
          %s325 = smul.addr %s324, 4
          %s326 = scalar_lea.vmem %s3, %s325
        $region24: #{model_forward.3} parent=11 // pred_fallthru
          _
      $region12: #{model_forward.3} parent=5 // pred_fallthru
        _
      %p327 = scmp.lt.s32.totalorder %s17, 3
      // Predicated region
      $region25: #{model_forward.3} parent=5 // pred_check
        %p328 = pneg %p327
      $region26: #{model_forward.3} parent=5 // pred_check_branch
        %330 = sbr.rel (%p328) target = $region28
      $region27: #{model_forward.3} parent=5 // pred_region
        // Predicated region
        $region29: #{model_forward.3} parent=27 // pred_check
          %p331 = pneg %p70
        $region30: #{model_forward.3} parent=27 // pred_check_branch
          %333 = sbr.rel (%p331) target = $region32
        $region31: #{model_forward.3} parent=27 // pred_region
          %p334 = scmp.lt.s32.totalorder %s25, 2
          %s335 = scalar_select %p334, %s25, 2
          %s336 = smul.addr %s335, 8
          %s337 = scalar_lea.vmem %s1, %s336
        $region32: #{model_forward.3} parent=27 // pred_fallthru
          _
      $region28: #{model_forward.3} parent=5 // pred_fallthru
        _
      %p338 = scmp.le.s32.totalorder 1, %s17
      %p339 = scmp.lt.s32.totalorder %s17, 4
      %p340 = pnand %p338, %p339
      %p341 = pneg %p340
      // Predicated region
      $region33: #{model_forward.3} parent=5 // pred_check
        _
      $region34: #{model_forward.3} parent=5 // pred_check_branch
        %343 = sbr.rel (%p340) target = $region36
      $region35: #{model_forward.3} parent=5 // pred_region
        %s344 = ssub.s32 %s17, 1
        // Predicated region
        $region37: #{model_forward.3} parent=35 // pred_check
          %p345 = pneg %p50
        $region38: #{model_forward.3} parent=35 // pred_check_branch
          %347 = sbr.rel (%p345) target = $region40
        $region39: #{model_forward.3} parent=35 // pred_region
          %348 = dma.done [#allocation7], 16
        $region40: #{model_forward.3} parent=35 // pred_fallthru
          _
        %349 = sfence
        %p350 = pneg %p50
        %p351 = pneg %p47
        %p352 = scmp.lt.s32.totalorder %s27, 2
        %s353 = scalar_select %p352, %s27, 2
        %s354 = smul.addr %s353, 8
        %s355 = scalar_lea.vmem %s1, %s354
        %p356 = pneg %p76
        %p357 = pneg %p73
        %p358 = pneg %p97
        %p359 = pneg %p94
        %p360 = scmp.lt.s32.totalorder %s26, 0
        %s361 = scalar_select %p360, %s26, 0
        %s362 = smul.addr %s361, 4
        %s363 = scalar_lea.vmem %s3, %s362
        %p364 = pneg %p123
        %p365 = pneg %p120
        %p366 = pneg %p151
        %p367 = pneg %p148
        %p368 = scmp.lt.s32.totalorder %s27, 2
        %s369 = scalar_select %p368, %s27, 2
        %p370 = scmp.lt.s32.totalorder %s26, 0
        %s371 = scalar_select %p370, %s26, 0
        %s372 = sadd.s32 %s371, %s369
        %s373 = smul.addr %s372, 8
        %s374 = scalar_lea.vmem %s4, %s373
        %p375 = pneg %p179
        %p376 = pneg %p176
        %p377 = scmp.lt.s32.totalorder %s27, 2
        %s378 = scalar_select %p377, %s27, 2
        %p379 = scmp.lt.s32.totalorder %s26, 0
        %s380 = scalar_select %p379, %s26, 0
        %s381 = sadd.s32 %s380, %s378
        %s382 = smul.addr %s381, 8
        %s383 = scalar_lea.vmem %s5, %s382
        %p384 = pneg %p207
        %p385 = pneg %p204
        %p386 = scmp.lt.s32.totalorder %s27, 2
        %s387 = scalar_select %p386, %s27, 2
        %p388 = scmp.lt.s32.totalorder %s26, 0
        %s389 = scalar_select %p388, %s26, 0
        %s390 = sadd.s32 %s389, %s387
        %s391 = smul.addr %s390, 8
        %s392 = scalar_lea.vmem %s6, %s391
        %p393 = pneg %p235
        %p394 = pneg %p232
        %p395 = scmp.lt.s32.totalorder %s27, 2
        %s396 = scalar_select %p395, %s27, 2
        %p397 = scmp.lt.s32.totalorder %s26, 0
        %s398 = scalar_select %p397, %s26, 0
        %s399 = sadd.s32 %s398, %s396
        %s400 = smul.addr %s399, 8
        %s401 = scalar_lea.vmem %s7, %s400
        %p402 = pneg %p263
        %p403 = pneg %p260
        %p404 = scmp.lt.s32.totalorder %s27, 2
        %s405 = scalar_select %p404, %s27, 2
        %p406 = scmp.lt.s32.totalorder %s26, 0
        %s407 = scalar_select %p406, %s26, 0
        %s408 = sadd.s32 %s407, %s405
        %s409 = smul.addr %s408, 8
        %s410 = scalar_lea.vmem %s8, %s409
        %p411 = pneg %p291
        %p412 = pneg %p288
        %p413 = scmp.lt.s32.totalorder %s27, 2
        %s414 = scalar_select %p413, %s27, 2
        %p415 = scmp.lt.s32.totalorder %s26, 0
        %s416 = scalar_select %p415, %s26, 0
        %s417 = sadd.s32 %s416, %s414
        %s418 = smul.addr %s417, 8
        %s419 = scalar_lea.vmem %s9, %s418
        %p420 = scmp.lt.s32.totalorder %s27, 2
        %s421 = scalar_select %p420, %s27, 2
        %s422 = smul.addr %s421, 8
        %s423 = scalar_lea.vmem %s1, %s422
        %p424 = scmp.lt.s32.totalorder %s26, 0
        %s425 = scalar_select %p424, %s26, 0
        %s426 = smul.addr %s425, 4
        %s427 = scalar_lea.vmem %s3, %s426
        %p428 = scmp.lt.s32.totalorder %s27, 2
        %s429 = scalar_select %p428, %s27, 2
        %p430 = scmp.lt.s32.totalorder %s26, 0
        %s431 = scalar_select %p430, %s26, 0
        %s432 = sadd.s32 %s431, %s429
        %s433 = smul.addr %s432, 8
        %s434 = scalar_lea.vmem %s4, %s433
        %p435 = scmp.lt.s32.totalorder %s27, 2
        %s436 = scalar_select %p435, %s27, 2
        %p437 = scmp.lt.s32.totalorder %s26, 0
        %s438 = scalar_select %p437, %s26, 0
        %s439 = sadd.s32 %s438, %s436
        %s440 = smul.addr %s439, 8
        %s441 = scalar_lea.vmem %s5, %s440
        %p442 = scmp.lt.s32.totalorder %s27, 2
        %s443 = scalar_select %p442, %s27, 2
        %p444 = scmp.lt.s32.totalorder %s26, 0
        %s445 = scalar_select %p444, %s26, 0
        %s446 = sadd.s32 %s445, %s443
        %s447 = smul.addr %s446, 8
        %s448 = scalar_lea.vmem %s6, %s447
        %p449 = scmp.lt.s32.totalorder %s27, 2
        %s450 = scalar_select %p449, %s27, 2
        %p451 = scmp.lt.s32.totalorder %s26, 0
        %s452 = scalar_select %p451, %s26, 0
        %s453 = sadd.s32 %s452, %s450
        %s454 = smul.addr %s453, 8
        %s455 = scalar_lea.vmem %s7, %s454
        %p456 = scmp.lt.s32.totalorder %s27, 2
        %s457 = scalar_select %p456, %s27, 2
        %p458 = scmp.lt.s32.totalorder %s26, 0
        %s459 = scalar_select %p458, %s26, 0
        %s460 = sadd.s32 %s459, %s457
        %s461 = smul.addr %s460, 8
        %s462 = scalar_lea.vmem %s8, %s461
        %p463 = scmp.lt.s32.totalorder %s27, 2
        %s464 = scalar_select %p463, %s27, 2
        %p465 = scmp.lt.s32.totalorder %s26, 0
        %s466 = scalar_select %p465, %s26, 0
        %s467 = sadd.s32 %s466, %s464
        %s468 = smul.addr %s467, 8
        %s469 = scalar_lea.vmem %s9, %s468
        %s470 = sld [smem:[#allocation6]]
        %s471 = sld [smem:[#allocation6 + $0x1]]
        %s472 = sld [smem:[#allocation6 + $0x2]]
        %p473 = scmp.eq.s32.totalorder %s27, 0
        // Predicated region
        $region41: #{model_forward.3} parent=35 // pred_check
          %p474 = pneg %p473
        $region42: #{model_forward.3} parent=35 // pred_check_branch
          %476 = sbr.rel (%p474) target = $region44
        $region43: #{model_forward.3} parent=35 // pred_region
          %477 = vst [vmem:[#allocation2] sm:$0xff] 0.0
          %478 = vst [vmem:[#allocation2 + $0x8] sm:$0xff] 0.0
          %479 = vst [vmem:[#allocation2 + $0x10] sm:$0xff] 0.0
          %480 = vst [vmem:[#allocation2 + $0x18] sm:$0xff] 0.0
          %481 = vst [vmem:[#allocation2 + $0x20] sm:$0xff] 0.0
          %482 = vst [vmem:[#allocation2 + $0x28] sm:$0xff] 0.0
          %483 = vst [vmem:[#allocation2 + $0x30] sm:$0xff] 0.0
          %484 = vst [vmem:[#allocation2 + $0x38] sm:$0xff] 0.0
          %485 = vst [vmem:[#allocation2 + $0x40] sm:$0xff] 0.0
          %486 = vst [vmem:[#allocation2 + $0x48] sm:$0xff] 0.0
          %487 = vst [vmem:[#allocation2 + $0x50] sm:$0xff] 0.0
          %488 = vst [vmem:[#allocation2 + $0x58] sm:$0xff] 0.0
          %489 = vst [vmem:[#allocation2 + $0x60] sm:$0xff] 0.0
          %490 = vst [vmem:[#allocation2 + $0x68] sm:$0xff] 0.0
          %491 = vst [vmem:[#allocation2 + $0x70] sm:$0xff] 0.0
          %492 = vst [vmem:[#allocation2 + $0x78] sm:$0xff] 0.0
          %v493 = vld [vmem:[%s427] sm:$0x1]
          %494 = vst [vmem:[#allocation3] sm:$0x1] %v493
          %v495 = vld [vmem:[%s427 + $0x1] sm:$0x1]
          %496 = vst [vmem:[#allocation4] sm:$0x1] %v495
          %v497 = vld [vmem:[%s427 + $0x2] sm:$0x1]
          %498 = vst [vmem:[#allocation5] sm:$0x1] %v497
        $region44: #{model_forward.3} parent=35 // pred_fallthru
          _
        %v499 = vld [vmem:[%s423] sm:$0xff]
        %v500 = vld [vmem:[#allocation2] sm:$0xff]
        %v501 = vld [vmem:[#allocation2 + $0x8] sm:$0xff]
        %v502 = vld [vmem:[#allocation2 + $0x10] sm:$0xff]
        %v503 = vld [vmem:[#allocation2 + $0x18] sm:$0xff]
        %v504 = vld [vmem:[#allocation2 + $0x20] sm:$0xff]
        %v505 = vld [vmem:[#allocation2 + $0x28] sm:$0xff]
        %v506 = vld [vmem:[#allocation2 + $0x30] sm:$0xff]
        %v507 = vld [vmem:[#allocation2 + $0x38] sm:$0xff]
        %v508 = vld [vmem:[#allocation2 + $0x40] sm:$0xff]
        %v509 = vld [vmem:[#allocation2 + $0x48] sm:$0xff]
        %v510 = vld [vmem:[#allocation2 + $0x50] sm:$0xff]
        %v511 = vld [vmem:[#allocation2 + $0x58] sm:$0xff]
        %v512 = vld [vmem:[#allocation2 + $0x60] sm:$0xff]
        %v513 = vld [vmem:[#allocation2 + $0x68] sm:$0xff]
        %v514 = vld [vmem:[#allocation2 + $0x70] sm:$0xff]
        %v515 = vld [vmem:[#allocation2 + $0x78] sm:$0xff]
        %516 = vmatprep.subr.mxu0 0.0
        %517 = vmatpush1.msra.mxu0 %v500
        %518 = vmatprep.subr.mxu0 0.0
        %519 = vmatpush1.msra.mxu0 %v501
        %520 = vmatprep.subr.mxu0 0.0
        %521 = vmatpush1.msra.mxu0 %v502
        %522 = vmatprep.subr.mxu0 0.0
        %523 = vmatpush1.msra.mxu0 %v503
        %524 = vmatprep.subr.mxu0 0.0
        %525 = vmatpush1.msra.mxu0 %v504
        %526 = vmatprep.subr.mxu0 0.0
        %527 = vmatpush1.msra.mxu0 %v505
        %528 = vmatprep.subr.mxu0 0.0
        %529 = vmatpush1.msra.mxu0 %v506
        %530 = vmatprep.subr.mxu0 0.0
        %531 = vmatpush1.msra.mxu0 %v507
        %532 = vmatprep.subr.mxu0 0.0
        %533 = vmatpush1.msra.mxu0 %v508
        %534 = vmatprep.subr.mxu0 0.0
        %535 = vmatpush1.msra.mxu0 %v509
        %536 = vmatprep.subr.mxu0 0.0
        %537 = vmatpush1.msra.mxu0 %v510
        %538 = vmatprep.subr.mxu0 0.0
        %539 = vmatpush1.msra.mxu0 %v511
        %540 = vmatprep.subr.mxu0 0.0
        %541 = vmatpush1.msra.mxu0 %v512
        %542 = vmatprep.subr.mxu0 0.0
        %543 = vmatpush1.msra.mxu0 %v513
        %544 = vmatprep.subr.mxu0 0.0
        %545 = vmatpush1.msra.mxu0 %v514
        %546 = vmatprep.subr.mxu0 0.0
        %547 = vmatpush1.msra.mxu0 %v515
        %548 = vmatprep.subr.mxu0 0.0
        %549 = vmatpush1.msra.mxu0 0.0
        %550 = vmatprep.subr.mxu0 0.0
        %551 = vmatpush1.msra.mxu0 0.0
        %552 = vmatprep.subr.mxu0 0.0
        %553 = vmatpush1.msra.mxu0 0.0
        %554 = vmatprep.subr.mxu0 0.0
        %555 = vmatpush1.msra.mxu0 0.0
        %556 = vmatprep.subr.mxu0 0.0
        %557 = vmatpush1.msra.mxu0 0.0
        %558 = vmatprep.subr.mxu0 0.0
        %559 = vmatpush1.msra.mxu0 0.0
        %560 = vmatprep.subr.mxu0 0.0
        %561 = vmatpush1.msra.mxu0 0.0
        %562 = vmatprep.subr.mxu0 0.0
        %563 = vmatpush1.msra.mxu0 0.0
        %564 = vmatprep.subr.mxu0 0.0
        %565 = vmatpush1.msra.mxu0 0.0
        %566 = vmatprep.subr.mxu0 0.0
        %567 = vmatpush1.msra.mxu0 0.0
        %568 = vmatprep.subr.mxu0 0.0
        %569 = vmatpush1.msra.mxu0 0.0
        %570 = vmatprep.subr.mxu0 0.0
        %571 = vmatpush1.msra.mxu0 0.0
        %572 = vmatprep.subr.mxu0 0.0
        %573 = vmatpush1.msra.mxu0 0.0
        %574 = vmatprep.subr.mxu0 0.0
        %575 = vmatpush1.msra.mxu0 0.0
        %576 = vmatprep.subr.mxu0 0.0
        %577 = vmatpush1.msra.mxu0 0.0
        %578 = vmatprep.subr.mxu0 0.0
        %579 = vmatpush1.msra.mxu0 0.0
        %580 = vmatprep.mubr.f32.mxu0 0.0
        %581 = vmatmul.mubr.f32.gmra.mrb[0].mxu0 %v499
        %v582 = vpop.f32.mrb[0].mxu0
        %v583 = vadd.f32 0.0, %v582
        %v584 = vpop.f32.mrb[0].mxu0
        %585 = vdwg.mxu0
        %v586 = vld [vmem:[%s2] sm:$0xff]
        %v587 = vld [vmem:[#allocation3] sm:$0x1]
        %v588 = vld [vmem:[#allocation4] sm:$0x1]
        %v589 = vld [vmem:[#allocation5] sm:$0x1]
        %v591 = vcombine.high %v586, %v586
        %v593 = vunpack.c.l.s4 1966171168
        %v594 = vunpack.c.0.s8 %v593
        %v595 = vlaneseq
        %v596 = vshrl.u32 %v595, 7
        %v597 = vsub.s32 %v594, %v596
        %v598 = vrot.slane %v586, %v597
        %v600 = vunpack.c.l.s4 1966171168
        %v601 = vunpack.c.0.s8 %v600
        %v602 = vlaneseq
        %v603 = vshrl.u32 %v602, 7
        %v604 = vsub.s32 %v601, %v603
        %v605 = vrot.slane %v591, %v604
        %v606 = vcombine.high %v605, %v605
        %v608 = vunpack.c.l.s4 1966171168
        %v609 = vunpack.c.0.s8 %v608
        %v610 = vlaneseq
        %v611 = vshrl.u32 %v610, 7
        %v612 = vsub.s32 %v609, %v611
        %v613 = vrot.slane %v598, %v612
        %v615 = vunpack.c.l.s4 1966171168
        %v616 = vunpack.c.0.s8 %v615
        %v617 = vlaneseq
        %v618 = vshrl.u32 %v617, 7
        %v619 = vsub.s32 %v616, %v618
        %v620 = vrot.slane %v606, %v619
        %v621 = vcombine.high %v620, %v620
        %v623 = vmul.f32 %v588, %v621
        %v624 = vadd.f32 %v623, 0.0
        %v625 = vadd.f32 %v583, %v624
        %v626 = vmul.f32 %v587, %v588
        %s627 = ssub.f32 0.0, %s470
        %v628 = vstv %s627
        %v629 = vmul.f32 %v628, %v626
        %v630 = vadd.f32 %v629, %v625
        %v631 = vstv %s470
        %v632 = vmul.f32 %v631, %v626
        %v633 = vstv %s471
        %v634 = vmul.f32 %v633, %v588
        %v635 = vsub.f32 %v632, %v634
        %v636 = vsub.f32 %v634, %v625
        %s637 = smul.u32 %s27, 8
        %p638 = scmp.lt.s32.totalorder %s637, 19
        %s639 = scalar_select %p638, 1, 0
        %v640 = vstv %s639
        %vm641 = vcmp.eq.s32.totalorder %v640, 1
        %v642 = vsel %vm641, %v630, 0.0
        %v643 = vsel %vm641, %v635, 0.0
        %v644 = vsel %vm641, %v636, 0.0
        %v645 = vstv %s472
        %v646 = vmul.f32 %v630, %v645
        %v647 = vadd.f32 %v587, %v646
        %v648 = vmul.f32 %v635, %v645
        %v649 = vadd.f32 %v588, %v648
        %v650 = vmul.f32 %v636, %v645
        %v651 = vadd.f32 %v589, %v650
        %v653 = vunpack.c.l.s4 1966171168
        %v654 = vunpack.c.0.s8 %v653
        %v655 = vlaneseq
        %v656 = vshrl.u32 %v655, 7
        %v657 = vsub.s32 %v654, %v656
        %v658 = vrot.slane %v605, %v657
        %v659 = vcombine.high %v658, %v658
        %v661 = vmul.f32 %v588, %v659
        %v662 = vadd.f32 %v661, 0.0
        %v663 = vmul.f32 %v649, %v621
        %v664 = vadd.f32 %v662, %v663
        %v666 = vlaneseq
        %v667 = vshrl.u32 %v666, 7
        %v668 = vsub.s32 0, %v667
        %v669 = vrot.slane %v664, %v668
        %v671 = vadd.f32 %v583, %v669
        %v672 = vmul.f32 %v647, %v649
        %v673 = vmul.f32 %v628, %v672
        %v676 = vunpack.c.l.s4 1966171168
        %v677 = vunpack.c.0.s8 %v676
        %v678 = vlaneseq
        %v679 = vshrl.u32 %v678, 7
        %v680 = vsub.s32 %v677, %v679
        %v681 = vrot.slane %v671, %v680
        %v682 = vcombine.high %v681, %v681
        %v684 = vunpack.c.l.s4 1966171168
        %v685 = vunpack.c.0.s8 %v684
        %v686 = vlaneseq
        %v687 = vshrl.u32 %v686, 7
        %v688 = vsub.s32 %v685, %v687
        %v689 = vrot.slane %v682, %v688
        %v691 = vadd.f32 %v673, %v689
        %v692 = vmul.f32 %v631, %v672
        %v693 = vmul.f32 %v633, %v649
        %v694 = vsub.f32 %v692, %v693
        %v695 = vsub.f32 %v693, %v689
        %s696 = sadd.s32 %s637, 1
        %p697 = scmp.lt.s32.totalorder %s696, 19
        %s698 = scalar_select %p697, 1, 0
        %v699 = vstv %s698
        %vm700 = vcmp.eq.s32.totalorder %v699, 1
        %v701 = vsel %vm700, %v691, 0.0
        %v702 = vsel %vm700, %v694, 0.0
        %v703 = vsel %vm700, %v695, 0.0
        %v704 = vmul.f32 %v691, %v645
        %v705 = vadd.f32 %v647, %v704
        %v706 = vmul.f32 %v694, %v645
        %v707 = vadd.f32 %v649, %v706
        %v708 = vmul.f32 %v695, %v645
        %v709 = vadd.f32 %v651, %v708
        %v711 = vmul.f32 %v588, %v620
        %v712 = vadd.f32 %v711, 0.0
        %v713 = vmul.f32 %v649, %v659
        %v714 = vadd.f32 %v712, %v713
        %v715 = vmul.f32 %v707, %v621
        %v716 = vadd.f32 %v714, %v715
        %v718 = vlaneseq
        %v719 = vshrl.u32 %v718, 7
        %v720 = vsub.s32 0, %v719
        %v721 = vrot.slane %v716, %v720
        %v723 = vadd.f32 %v583, %v721
        %v724 = vmul.f32 %v705, %v707
        %v725 = vmul.f32 %v628, %v724
        %v728 = vunpack.c.l.s4 1966171168
        %v729 = vunpack.c.0.s8 %v728
        %v730 = vlaneseq
        %v731 = vshrl.u32 %v730, 7
        %v732 = vsub.s32 %v729, %v731
        %v733 = vrot.slane %v723, %v732
        %v735 = vunpack.c.l.s4 1966171168
        %v736 = vunpack.c.0.s8 %v735
        %v737 = vlaneseq
        %v738 = vshrl.u32 %v737, 7
        %v739 = vsub.s32 %v736, %v738
        %v740 = vrot.slane %v733, %v739
        %v741 = vcombine.high %v740, %v740
        %v743 = vadd.f32 %v725, %v741
        %v744 = vmul.f32 %v631, %v724
        %v745 = vmul.f32 %v633, %v707
        %v746 = vsub.f32 %v744, %v745
        %v747 = vsub.f32 %v745, %v741
        %s748 = sadd.s32 %s637, 2
        %p749 = scmp.lt.s32.totalorder %s748, 19
        %s750 = scalar_select %p749, 1, 0
        %v751 = vstv %s750
        %vm752 = vcmp.eq.s32.totalorder %v751, 1
        %v753 = vsel %vm752, %v743, 0.0
        %v754 = vsel %vm752, %v746, 0.0
        %v755 = vsel %vm752, %v747, 0.0
        %v756 = vmul.f32 %v743, %v645
        %v757 = vadd.f32 %v705, %v756
        %v758 = vmul.f32 %v746, %v645
        %v759 = vadd.f32 %v707, %v758
        %v760 = vmul.f32 %v747, %v645
        %v761 = vadd.f32 %v709, %v760
        %v763 = vmul.f32 %v588, %v658
        %v764 = vadd.f32 %v763, 0.0
        %v765 = vmul.f32 %v649, %v620
        %v766 = vadd.f32 %v764, %v765
        %v767 = vmul.f32 %v707, %v659
        %v768 = vadd.f32 %v766, %v767
        %v769 = vmul.f32 %v759, %v621
        %v770 = vadd.f32 %v768, %v769
        %v772 = vlaneseq
        %v773 = vshrl.u32 %v772, 7
        %v774 = vsub.s32 0, %v773
        %v775 = vrot.slane %v770, %v774
        %v777 = vadd.f32 %v583, %v775
        %v778 = vmul.f32 %v757, %v759
        %v779 = vmul.f32 %v628, %v778
        %v782 = vunpack.c.l.s4 1966171168
        %v783 = vunpack.c.0.s8 %v782
        %v784 = vlaneseq
        %v785 = vshrl.u32 %v784, 7
        %v786 = vsub.s32 %v783, %v785
        %v787 = vrot.slane %v777, %v786
        %v788 = vcombine.high %v787, %v787
        %v790 = vunpack.c.l.s4 1966171168
        %v791 = vunpack.c.0.s8 %v790
        %v792 = vlaneseq
        %v793 = vshrl.u32 %v792, 7
        %v794 = vsub.s32 %v791, %v793
        %v795 = vrot.slane %v788, %v794
        %v796 = vcombine.high %v795, %v795
        %v798 = vadd.f32 %v779, %v796
        %v799 = vmul.f32 %v631, %v778
        %v800 = vmul.f32 %v633, %v759
        %v801 = vsub.f32 %v799, %v800
        %v802 = vsub.f32 %v800, %v796
        %s803 = sadd.s32 %s637, 3
        %p804 = scmp.lt.s32.totalorder %s803, 19
        %s805 = scalar_select %p804, 1, 0
        %v806 = vstv %s805
        %vm807 = vcmp.eq.s32.totalorder %v806, 1
        %v808 = vsel %vm807, %v798, 0.0
        %v809 = vsel %vm807, %v801, 0.0
        %v810 = vsel %vm807, %v802, 0.0
        %v811 = vmul.f32 %v798, %v645
        %v812 = vadd.f32 %v757, %v811
        %v813 = vmul.f32 %v801, %v645
        %v814 = vadd.f32 %v759, %v813
        %v815 = vmul.f32 %v802, %v645
        %v816 = vadd.f32 %v761, %v815
        %v817 = vcombine.high %v598, %v598
        %v819 = vunpack.c.l.s4 1966171168
        %v820 = vunpack.c.0.s8 %v819
        %v821 = vlaneseq
        %v822 = vshrl.u32 %v821, 7
        %v823 = vsub.s32 %v820, %v822
        %v824 = vrot.slane %v817, %v823
        %v825 = vcombine.high %v824, %v824
        %v827 = vmul.f32 %v588, %v825
        %v828 = vadd.f32 %v827, 0.0
        %v829 = vmul.f32 %v649, %v658
        %v830 = vadd.f32 %v828, %v829
        %v831 = vmul.f32 %v707, %v620
        %v832 = vadd.f32 %v830, %v831
        %v833 = vmul.f32 %v759, %v659
        %v834 = vadd.f32 %v832, %v833
        %v835 = vmul.f32 %v814, %v621
        %v836 = vadd.f32 %v834, %v835
        %v838 = vlaneseq
        %v839 = vshrl.u32 %v838, 7
        %v840 = vsub.s32 0, %v839
        %v841 = vrot.slane %v836, %v840
        %v843 = vadd.f32 %v583, %v841
        %v844 = vmul.f32 %v812, %v814
        %v845 = vmul.f32 %v628, %v844
        %v847 = vcombine.high %v843, %v843
        %v849 = vunpack.c.l.s4 1966171168
        %v850 = vunpack.c.0.s8 %v849
        %v851 = vlaneseq
        %v852 = vshrl.u32 %v851, 7
        %v853 = vsub.s32 %v850, %v852
        %v854 = vrot.slane %v847, %v853
        %v856 = vunpack.c.l.s4 1966171168
        %v857 = vunpack.c.0.s8 %v856
        %v858 = vlaneseq
        %v859 = vshrl.u32 %v858, 7
        %v860 = vsub.s32 %v857, %v859
        %v861 = vrot.slane %v854, %v860
        %v863 = vadd.f32 %v845, %v861
        %v864 = vmul.f32 %v631, %v844
        %v865 = vmul.f32 %v633, %v814
        %v866 = vsub.f32 %v864, %v865
        %v867 = vsub.f32 %v865, %v861
        %s868 = sadd.s32 %s637, 4
        %p869 = scmp.lt.s32.totalorder %s868, 19
        %s870 = scalar_select %p869, 1, 0
        %v871 = vstv %s870
        %vm872 = vcmp.eq.s32.totalorder %v871, 1
        %v873 = vsel %vm872, %v863, 0.0
        %v874 = vsel %vm872, %v866, 0.0
        %v875 = vsel %vm872, %v867, 0.0
        %v876 = vmul.f32 %v863, %v645
        %v877 = vadd.f32 %v812, %v876
        %v878 = vmul.f32 %v866, %v645
        %v879 = vadd.f32 %v814, %v878
        %v880 = vmul.f32 %v867, %v645
        %v881 = vadd.f32 %v816, %v880
        %v882 = vcombine.high %v613, %v613
        %v884 = vmul.f32 %v588, %v882
        %v885 = vadd.f32 %v884, 0.0
        %v886 = vmul.f32 %v649, %v825
        %v887 = vadd.f32 %v885, %v886
        %v888 = vmul.f32 %v707, %v658
        %v889 = vadd.f32 %v887, %v888
        %v890 = vmul.f32 %v759, %v620
        %v891 = vadd.f32 %v889, %v890
        %v892 = vmul.f32 %v814, %v659
        %v893 = vadd.f32 %v891, %v892
        %v894 = vmul.f32 %v879, %v621
        %v895 = vadd.f32 %v893, %v894
        %v897 = vlaneseq
        %v898 = vshrl.u32 %v897, 7
        %v899 = vsub.s32 0, %v898
        %v900 = vrot.slane %v895, %v899
        %v902 = vadd.f32 %v583, %v900
        %v903 = vmul.f32 %v877, %v879
        %v904 = vmul.f32 %v628, %v903
        %v906 = vcombine.high %v902, %v902
        %v908 = vunpack.c.l.s4 1966171168
        %v909 = vunpack.c.0.s8 %v908
        %v910 = vlaneseq
        %v911 = vshrl.u32 %v910, 7
        %v912 = vsub.s32 %v909, %v911
        %v913 = vrot.slane %v906, %v912
        %v914 = vcombine.high %v913, %v913
        %v916 = vunpack.c.l.s4 1966171168
        %v917 = vunpack.c.0.s8 %v916
        %v918 = vlaneseq
        %v919 = vshrl.u32 %v918, 7
        %v920 = vsub.s32 %v917, %v919
        %v921 = vrot.slane %v914, %v920
        %v923 = vadd.f32 %v904, %v921
        %v924 = vmul.f32 %v631, %v903
        %v925 = vmul.f32 %v633, %v879
        %v926 = vsub.f32 %v924, %v925
        %v927 = vsub.f32 %v925, %v921
        %s928 = sadd.s32 %s637, 5
        %p929 = scmp.lt.s32.totalorder %s928, 19
        %s930 = scalar_select %p929, 1, 0
        %v931 = vstv %s930
        %vm932 = vcmp.eq.s32.totalorder %v931, 1
        %v933 = vsel %vm932, %v923, 0.0
        %v934 = vsel %vm932, %v926, 0.0
        %v935 = vsel %vm932, %v927, 0.0
        %v936 = vmul.f32 %v923, %v645
        %v937 = vadd.f32 %v877, %v936
        %v938 = vmul.f32 %v926, %v645
        %v939 = vadd.f32 %v879, %v938
        %v940 = vmul.f32 %v927, %v645
        %v941 = vadd.f32 %v881, %v940
        %v943 = vmul.f32 %v588, %v824
        %v944 = vadd.f32 %v943, 0.0
        %v945 = vmul.f32 %v649, %v882
        %v946 = vadd.f32 %v944, %v945
        %v947 = vmul.f32 %v707, %v825
        %v948 = vadd.f32 %v946, %v947
        %v949 = vmul.f32 %v759, %v658
        %v950 = vadd.f32 %v948, %v949
        %v951 = vmul.f32 %v814, %v620
        %v952 = vadd.f32 %v950, %v951
        %v953 = vmul.f32 %v879, %v659
        %v954 = vadd.f32 %v952, %v953
        %v955 = vmul.f32 %v939, %v621
        %v956 = vadd.f32 %v954, %v955
        %v958 = vlaneseq
        %v959 = vshrl.u32 %v958, 7
        %v960 = vsub.s32 0, %v959
        %v961 = vrot.slane %v956, %v960
        %v963 = vadd.f32 %v583, %v961
        %v964 = vmul.f32 %v937, %v939
        %v965 = vmul.f32 %v628, %v964
        %v967 = vcombine.high %v963, %v963
        %v969 = vunpack.c.l.s4 1966171168
        %v970 = vunpack.c.0.s8 %v969
        %v971 = vlaneseq
        %v972 = vshrl.u32 %v971, 7
        %v973 = vsub.s32 %v970, %v972
        %v974 = vrot.slane %v967, %v973
        %v976 = vunpack.c.l.s4 1966171168
        %v977 = vunpack.c.0.s8 %v976
        %v978 = vlaneseq
        %v979 = vshrl.u32 %v978, 7
        %v980 = vsub.s32 %v977, %v979
        %v981 = vrot.slane %v974, %v980
        %v982 = vcombine.high %v981, %v981
        %v984 = vadd.f32 %v965, %v982
        %v985 = vmul.f32 %v631, %v964
        %v986 = vmul.f32 %v633, %v939
        %v987 = vsub.f32 %v985, %v986
        %v988 = vsub.f32 %v986, %v982
        %s989 = sadd.s32 %s637, 6
        %p990 = scmp.lt.s32.totalorder %s989, 19
        %s991 = scalar_select %p990, 1, 0
        %v992 = vstv %s991
        %vm993 = vcmp.eq.s32.totalorder %v992, 1
        %v994 = vsel %vm993, %v984, 0.0
        %v995 = vsel %vm993, %v987, 0.0
        %v996 = vsel %vm993, %v988, 0.0
        %v997 = vmul.f32 %v984, %v645
        %v998 = vadd.f32 %v937, %v997
        %v999 = vmul.f32 %v987, %v645
        %v1000 = vadd.f32 %v939, %v999
        %v1001 = vmul.f32 %v988, %v645
        %v1002 = vadd.f32 %v941, %v1001
        %v1003 = vmul.f32 %v588, %v586
        %v1004 = vadd.f32 %v1003, 0.0
        %v1005 = vmul.f32 %v649, %v824
        %v1006 = vadd.f32 %v1004, %v1005
        %v1007 = vmul.f32 %v707, %v882
        %v1008 = vadd.f32 %v1006, %v1007
        %v1009 = vmul.f32 %v759, %v825
        %v1010 = vadd.f32 %v1008, %v1009
        %v1011 = vmul.f32 %v814, %v658
        %v1012 = vadd.f32 %v1010, %v1011
        %v1013 = vmul.f32 %v879, %v620
        %v1014 = vadd.f32 %v1012, %v1013
        %v1015 = vmul.f32 %v939, %v659
        %v1016 = vadd.f32 %v1014, %v1015
        %v1017 = vmul.f32 %v1000, %v621
        %v1018 = vadd.f32 %v1016, %v1017
        %v1020 = vlaneseq
        %v1021 = vshrl.u32 %v1020, 7
        %v1022 = vsub.s32 0, %v1021
        %v1023 = vrot.slane %v1018, %v1022
        %v1025 = vadd.f32 %v583, %v1023
        %v1026 = vmul.f32 %v998, %v1000
        %v1027 = vmul.f32 %v628, %v1026
        %v1029 = vcombine.high %v1025, %v1025
        %v1031 = vunpack.c.l.s4 1966171168
        %v1032 = vunpack.c.0.s8 %v1031
        %v1033 = vlaneseq
        %v1034 = vshrl.u32 %v1033, 7
        %v1035 = vsub.s32 %v1032, %v1034
        %v1036 = vrot.slane %v1029, %v1035
        %v1037 = vcombine.high %v1036, %v1036
        %v1039 = vunpack.c.l.s4 1966171168
        %v1040 = vunpack.c.0.s8 %v1039
        %v1041 = vlaneseq
        %v1042 = vshrl.u32 %v1041, 7
        %v1043 = vsub.s32 %v1040, %v1042
        %v1044 = vrot.slane %v1037, %v1043
        %v1045 = vcombine.high %v1044, %v1044
        %v1047 = vadd.f32 %v1027, %v1045
        %v1048 = vmul.f32 %v631, %v1026
        %v1049 = vmul.f32 %v633, %v1000
        %v1050 = vsub.f32 %v1048, %v1049
        %v1051 = vsub.f32 %v1049, %v1045
        %s1052 = sadd.s32 %s637, 7
        %p1053 = scmp.lt.s32.totalorder %s1052, 19
        %s1054 = scalar_select %p1053, 1, 0
        %v1055 = vstv %s1054
        %vm1056 = vcmp.eq.s32.totalorder %v1055, 1
        %v1057 = vsel %vm1056, %v1047, 0.0
        %v1058 = vsel %vm1056, %v1050, 0.0
        %v1059 = vsel %vm1056, %v1051, 0.0
        %v1060 = vmul.f32 %v1047, %v645
        %v1061 = vadd.f32 %v998, %v1060
        %v1062 = vmul.f32 %v1050, %v645
        %v1063 = vadd.f32 %v1000, %v1062
        %v1064 = vmul.f32 %v1051, %v645
        %v1065 = vadd.f32 %v1002, %v1064
        %1066 = vst [vmem:[#allocation3] sm:$0x1] %v1061
        %1067 = vst [vmem:[#allocation4] sm:$0x1] %v1063
        %1068 = vst [vmem:[#allocation5] sm:$0x1] %v1065
        %v1070 = vlaneseq
        %v1071 = vshrl.u32 %v1070, 7
        %v1072 = vsub.s32 0, %v1071
        %v1073 = vrot.slane %v647, %v1072
        %v1076 = vlaneseq
        %v1077 = vshrl.u32 %v1076, 7
        %v1078 = vsub.s32 0, %v1077
        %v1079 = vrot.slane %v705, %v1078
        %v1082 = vlaneseq
        %v1083 = vshrl.u32 %v1082, 7
        %v1084 = vsub.s32 0, %v1083
        %v1085 = vrot.slane %v757, %v1084
        %v1088 = vlaneseq
        %v1089 = vshrl.u32 %v1088, 7
        %v1090 = vsub.s32 0, %v1089
        %v1091 = vrot.slane %v812, %v1090
        %v1094 = vlaneseq
        %v1095 = vshrl.u32 %v1094, 7
        %v1096 = vsub.s32 0, %v1095
        %v1097 = vrot.slane %v877, %v1096
        %v1100 = vlaneseq
        %v1101 = vshrl.u32 %v1100, 7
        %v1102 = vsub.s32 0, %v1101
        %v1103 = vrot.slane %v937, %v1102
        %v1106 = vlaneseq
        %v1107 = vshrl.u32 %v1106, 7
        %v1108 = vsub.s32 0, %v1107
        %v1109 = vrot.slane %v998, %v1108
        %vm1111 = vcmask 1040384
        %v1112 = vsel %vm1111, %v587, %v1073
        %vm1113 = vcmask 1041408
        %v1114 = vsel %vm1113, %v1112, %v1079
        %vm1115 = vcmask 1042432
        %v1116 = vsel %vm1115, %v1114, %v1085
        %vm1117 = vcmask 1043456
        %v1118 = vsel %vm1117, %v1116, %v1091
        %vm1119 = vcmask 1044480
        %v1120 = vsel %vm1119, %v1118, %v1097
        %vm1121 = vcmask 1045504
        %v1122 = vsel %vm1121, %v1120, %v1103
        %vm1123 = vcmask 1046528
        %v1124 = vsel %vm1123, %v1122, %v1109
        %v1126 = vlaneseq
        %v1127 = vshrl.u32 %v1126, 7
        %v1128 = vsub.s32 0, %v1127
        %v1129 = vrot.slane %v649, %v1128
        %v1132 = vlaneseq
        %v1133 = vshrl.u32 %v1132, 7
        %v1134 = vsub.s32 0, %v1133
        %v1135 = vrot.slane %v707, %v1134
        %v1138 = vlaneseq
        %v1139 = vshrl.u32 %v1138, 7
        %v1140 = vsub.s32 0, %v1139
        %v1141 = vrot.slane %v759, %v1140
        %v1144 = vlaneseq
        %v1145 = vshrl.u32 %v1144, 7
        %v1146 = vsub.s32 0, %v1145
        %v1147 = vrot.slane %v814, %v1146
        %v1150 = vlaneseq
        %v1151 = vshrl.u32 %v1150, 7
        %v1152 = vsub.s32 0, %v1151
        %v1153 = vrot.slane %v879, %v1152
        %v1156 = vlaneseq
        %v1157 = vshrl.u32 %v1156, 7
        %v1158 = vsub.s32 0, %v1157
        %v1159 = vrot.slane %v939, %v1158
        %v1162 = vlaneseq
        %v1163 = vshrl.u32 %v1162, 7
        %v1164 = vsub.s32 0, %v1163
        %v1165 = vrot.slane %v1000, %v1164
        %v1167 = vsel %vm1111, %v588, %v1129
        %v1168 = vsel %vm1113, %v1167, %v1135
        %v1169 = vsel %vm1115, %v1168, %v1141
        %v1170 = vsel %vm1117, %v1169, %v1147
        %v1171 = vsel %vm1119, %v1170, %v1153
        %v1172 = vsel %vm1121, %v1171, %v1159
        %v1173 = vsel %vm1123, %v1172, %v1165
        %v1175 = vlaneseq
        %v1176 = vshrl.u32 %v1175, 7
        %v1177 = vsub.s32 0, %v1176
        %v1178 = vrot.slane %v651, %v1177
        %v1181 = vlaneseq
        %v1182 = vshrl.u32 %v1181, 7
        %v1183 = vsub.s32 0, %v1182
        %v1184 = vrot.slane %v709, %v1183
        %v1187 = vlaneseq
        %v1188 = vshrl.u32 %v1187, 7
        %v1189 = vsub.s32 0, %v1188
        %v1190 = vrot.slane %v761, %v1189
        %v1193 = vlaneseq
        %v1194 = vshrl.u32 %v1193, 7
        %v1195 = vsub.s32 0, %v1194
        %v1196 = vrot.slane %v816, %v1195
        %v1199 = vlaneseq
        %v1200 = vshrl.u32 %v1199, 7
        %v1201 = vsub.s32 0, %v1200
        %v1202 = vrot.slane %v881, %v1201
        %v1205 = vlaneseq
        %v1206 = vshrl.u32 %v1205, 7
        %v1207 = vsub.s32 0, %v1206
        %v1208 = vrot.slane %v941, %v1207
        %v1211 = vlaneseq
        %v1212 = vshrl.u32 %v1211, 7
        %v1213 = vsub.s32 0, %v1212
        %v1214 = vrot.slane %v1002, %v1213
        %v1216 = vsel %vm1111, %v589, %v1178
        %v1217 = vsel %vm1113, %v1216, %v1184
        %v1218 = vsel %vm1115, %v1217, %v1190
        %v1219 = vsel %vm1117, %v1218, %v1196
        %v1220 = vsel %vm1119, %v1219, %v1202
        %v1221 = vsel %vm1121, %v1220, %v1208
        %v1222 = vsel %vm1123, %v1221, %v1214
        %1223 = vst [vmem:[%s434] sm:$0xff] %v1124
        %1224 = vst [vmem:[%s441] sm:$0xff] %v1173
        %1225 = vst [vmem:[%s448] sm:$0xff] %v1222
        %v1227 = vlaneseq
        %v1228 = vshrl.u32 %v1227, 7
        %v1229 = vsub.s32 0, %v1228
        %v1230 = vrot.slane %v701, %v1229
        %v1233 = vlaneseq
        %v1234 = vshrl.u32 %v1233, 7
        %v1235 = vsub.s32 0, %v1234
        %v1236 = vrot.slane %v753, %v1235
        %v1239 = vlaneseq
        %v1240 = vshrl.u32 %v1239, 7
        %v1241 = vsub.s32 0, %v1240
        %v1242 = vrot.slane %v808, %v1241
        %v1245 = vlaneseq
        %v1246 = vshrl.u32 %v1245, 7
        %v1247 = vsub.s32 0, %v1246
        %v1248 = vrot.slane %v873, %v1247
        %v1251 = vlaneseq
        %v1252 = vshrl.u32 %v1251, 7
        %v1253 = vsub.s32 0, %v1252
        %v1254 = vrot.slane %v933, %v1253
        %v1257 = vlaneseq
        %v1258 = vshrl.u32 %v1257, 7
        %v1259 = vsub.s32 0, %v1258
        %v1260 = vrot.slane %v994, %v1259
        %v1263 = vlaneseq
        %v1264 = vshrl.u32 %v1263, 7
        %v1265 = vsub.s32 0, %v1264
        %v1266 = vrot.slane %v1057, %v1265
        %v1268 = vsel %vm1111, %v642, %v1230
        %v1269 = vsel %vm1113, %v1268, %v1236
        %v1270 = vsel %vm1115, %v1269, %v1242
        %v1271 = vsel %vm1117, %v1270, %v1248
        %v1272 = vsel %vm1119, %v1271, %v1254
        %v1273 = vsel %vm1121, %v1272, %v1260
        %v1274 = vsel %vm1123, %v1273, %v1266
        %1275 = vst [vmem:[%s455] sm:$0xff] %v1274
        %v1277 = vlaneseq
        %v1278 = vshrl.u32 %v1277, 7
        %v1279 = vsub.s32 0, %v1278
        %v1280 = vrot.slane %v702, %v1279
        %v1283 = vlaneseq
        %v1284 = vshrl.u32 %v1283, 7
        %v1285 = vsub.s32 0, %v1284
        %v1286 = vrot.slane %v754, %v1285
        %v1289 = vlaneseq
        %v1290 = vshrl.u32 %v1289, 7
        %v1291 = vsub.s32 0, %v1290
        %v1292 = vrot.slane %v809, %v1291
        %v1295 = vlaneseq
        %v1296 = vshrl.u32 %v1295, 7
        %v1297 = vsub.s32 0, %v1296
        %v1298 = vrot.slane %v874, %v1297
        %v1301 = vlaneseq
        %v1302 = vshrl.u32 %v1301, 7
        %v1303 = vsub.s32 0, %v1302
        %v1304 = vrot.slane %v934, %v1303
        %v1307 = vlaneseq
        %v1308 = vshrl.u32 %v1307, 7
        %v1309 = vsub.s32 0, %v1308
        %v1310 = vrot.slane %v995, %v1309
        %v1313 = vlaneseq
        %v1314 = vshrl.u32 %v1313, 7
        %v1315 = vsub.s32 0, %v1314
        %v1316 = vrot.slane %v1058, %v1315
        %v1318 = vsel %vm1111, %v643, %v1280
        %v1319 = vsel %vm1113, %v1318, %v1286
        %v1320 = vsel %vm1115, %v1319, %v1292
        %v1321 = vsel %vm1117, %v1320, %v1298
        %v1322 = vsel %vm1119, %v1321, %v1304
        %v1323 = vsel %vm1121, %v1322, %v1310
        %v1324 = vsel %vm1123, %v1323, %v1316
        %1325 = vst [vmem:[%s462] sm:$0xff] %v1324
        %v1327 = vlaneseq
        %v1328 = vshrl.u32 %v1327, 7
        %v1329 = vsub.s32 0, %v1328
        %v1330 = vrot.slane %v703, %v1329
        %v1333 = vlaneseq
        %v1334 = vshrl.u32 %v1333, 7
        %v1335 = vsub.s32 0, %v1334
        %v1336 = vrot.slane %v755, %v1335
        %v1339 = vlaneseq
        %v1340 = vshrl.u32 %v1339, 7
        %v1341 = vsub.s32 0, %v1340
        %v1342 = vrot.slane %v810, %v1341
        %v1345 = vlaneseq
        %v1346 = vshrl.u32 %v1345, 7
        %v1347 = vsub.s32 0, %v1346
        %v1348 = vrot.slane %v875, %v1347
        %v1351 = vlaneseq
        %v1352 = vshrl.u32 %v1351, 7
        %v1353 = vsub.s32 0, %v1352
        %v1354 = vrot.slane %v935, %v1353
        %v1357 = vlaneseq
        %v1358 = vshrl.u32 %v1357, 7
        %v1359 = vsub.s32 0, %v1358
        %v1360 = vrot.slane %v996, %v1359
        %v1363 = vlaneseq
        %v1364 = vshrl.u32 %v1363, 7
        %v1365 = vsub.s32 0, %v1364
        %v1366 = vrot.slane %v1059, %v1365
        %v1368 = vsel %vm1111, %v644, %v1330
        %v1369 = vsel %vm1113, %v1368, %v1336
        %v1370 = vsel %vm1115, %v1369, %v1342
        %v1371 = vsel %vm1117, %v1370, %v1348
        %v1372 = vsel %vm1119, %v1371, %v1354
        %v1373 = vsel %vm1121, %v1372, %v1360
        %v1374 = vsel %vm1123, %v1373, %v1366
        %1375 = vst [vmem:[%s469] sm:$0xff] %v1374
        %s1376 = scalar_lea.vmem [#allocation2], %s637
        %1377 = vst [vmem:[%s1376] sm:$0xff] %v1173
        %p1378 = scmp.lt.s32.totalorder %s27, 2
        %s1379 = scalar_select %p1378, %s27, 2
        %p1380 = scmp.lt.s32.totalorder %s26, 0
        %s1381 = scalar_select %p1380, %s26, 0
        %s1382 = sadd.s32 %s1381, %s1379
        %s1383 = smul.addr %s1382, 8
        %s1384 = scalar_lea.vmem %s4, %s1383
        %p1385 = scmp.lt.s32.totalorder %s27, 2
        %s1386 = scalar_select %p1385, %s27, 2
        %p1387 = scmp.lt.s32.totalorder %s26, 0
        %s1388 = scalar_select %p1387, %s26, 0
        %s1389 = sadd.s32 %s1388, %s1386
        %s1390 = smul.addr %s1389, 8
        %s1391 = scalar_lea.vmem %s5, %s1390
        %p1392 = scmp.lt.s32.totalorder %s27, 2
        %s1393 = scalar_select %p1392, %s27, 2
        %p1394 = scmp.lt.s32.totalorder %s26, 0
        %s1395 = scalar_select %p1394, %s26, 0
        %s1396 = sadd.s32 %s1395, %s1393
        %s1397 = smul.addr %s1396, 8
        %s1398 = scalar_lea.vmem %s6, %s1397
        %p1399 = scmp.lt.s32.totalorder %s27, 2
        %s1400 = scalar_select %p1399, %s27, 2
        %p1401 = scmp.lt.s32.totalorder %s26, 0
        %s1402 = scalar_select %p1401, %s26, 0
        %s1403 = sadd.s32 %s1402, %s1400
        %s1404 = smul.addr %s1403, 8
        %s1405 = scalar_lea.vmem %s7, %s1404
        %p1406 = scmp.lt.s32.totalorder %s27, 2
        %s1407 = scalar_select %p1406, %s27, 2
        %p1408 = scmp.lt.s32.totalorder %s26, 0
        %s1409 = scalar_select %p1408, %s26, 0
        %s1410 = sadd.s32 %s1409, %s1407
        %s1411 = smul.addr %s1410, 8
        %s1412 = scalar_lea.vmem %s8, %s1411
        %p1413 = scmp.lt.s32.totalorder %s27, 2
        %s1414 = scalar_select %p1413, %s27, 2
        %p1415 = scmp.lt.s32.totalorder %s26, 0
        %s1416 = scalar_select %p1415, %s26, 0
        %s1417 = sadd.s32 %s1416, %s1414
        %s1418 = smul.addr %s1417, 8
        %s1419 = scalar_lea.vmem %s9, %s1418
        // Predicated region
        $region45: #{model_forward.3} parent=35 // pred_check
          %p1420 = pneg %p148
        $region46: #{model_forward.3} parent=35 // pred_check_branch
          %1422 = sbr.rel (%p1420) target = $region48
        $region47: #{model_forward.3} parent=35 // pred_region
          _
        $region48: #{model_forward.3} parent=35 // pred_fallthru
          _
        // Predicated region
        $region49: #{model_forward.3} parent=35 // pred_check
          %p1423 = pneg %p176
        $region50: #{model_forward.3} parent=35 // pred_check_branch
          %1425 = sbr.rel (%p1423) target = $region52
        $region51: #{model_forward.3} parent=35 // pred_region
          _
        $region52: #{model_forward.3} parent=35 // pred_fallthru
          _
        // Predicated region
        $region53: #{model_forward.3} parent=35 // pred_check
          %p1426 = pneg %p204
        $region54: #{model_forward.3} parent=35 // pred_check_branch
          %1428 = sbr.rel (%p1426) target = $region56
        $region55: #{model_forward.3} parent=35 // pred_region
          _
        $region56: #{model_forward.3} parent=35 // pred_fallthru
          _
        // Predicated region
        $region57: #{model_forward.3} parent=35 // pred_check
          %p1429 = pneg %p232
        $region58: #{model_forward.3} parent=35 // pred_check_branch
          %1431 = sbr.rel (%p1429) target = $region60
        $region59: #{model_forward.3} parent=35 // pred_region
          _
        $region60: #{model_forward.3} parent=35 // pred_fallthru
          _
        // Predicated region
        $region61: #{model_forward.3} parent=35 // pred_check
          %p1432 = pneg %p260
        $region62: #{model_forward.3} parent=35 // pred_check_branch
          %1434 = sbr.rel (%p1432) target = $region64
        $region63: #{model_forward.3} parent=35 // pred_region
          _
        $region64: #{model_forward.3} parent=35 // pred_fallthru
          _
        // Predicated region
        $region65: #{model_forward.3} parent=35 // pred_check
          %p1435 = pneg %p288
        $region66: #{model_forward.3} parent=35 // pred_check_branch
          %1437 = sbr.rel (%p1435) target = $region68
        $region67: #{model_forward.3} parent=35 // pred_region
          _
        $region68: #{model_forward.3} parent=35 // pred_fallthru
          _
      $region36: #{model_forward.3} parent=5 // pred_fallthru
        _
      %p1438 = scmp.le.s32.totalorder 2, %s17
      // Predicated region
      $region69: #{model_forward.3} parent=5 // pred_check
        %p1439 = pneg %p1438
      $region70: #{model_forward.3} parent=5 // pred_check_branch
        %1441 = sbr.rel (%p1439) target = $region72
      $region71: #{model_forward.3} parent=5 // pred_region
        %s1442 = ssub.s32 %s17, 2
        // Predicated region
        $region73: #{model_forward.3} parent=71 // pred_check
          %p1443 = pneg %p154
        $region74: #{model_forward.3} parent=71 // pred_check_branch
          %1445 = sbr.rel (%p1443) target = $region76
        $region75: #{model_forward.3} parent=71 // pred_region
          %p1446 = scmp.lt.s32.totalorder %s29, 2
          %s1447 = scalar_select %p1446, %s29, 2
          %p1448 = scmp.lt.s32.totalorder %s28, 0
          %s1449 = scalar_select %p1448, %s28, 0
          %s1450 = sadd.s32 %s1449, %s1447
          %s1451 = smul.addr %s1450, 8
          %s1452 = scalar_lea.vmem %s4, %s1451
        $region76: #{model_forward.3} parent=71 // pred_fallthru
          _
        // Predicated region
        $region77: #{model_forward.3} parent=71 // pred_check
          %p1453 = pneg %p182
        $region78: #{model_forward.3} parent=71 // pred_check_branch
          %1455 = sbr.rel (%p1453) target = $region80
        $region79: #{model_forward.3} parent=71 // pred_region
          %p1456 = scmp.lt.s32.totalorder %s29, 2
          %s1457 = scalar_select %p1456, %s29, 2
          %p1458 = scmp.lt.s32.totalorder %s28, 0
          %s1459 = scalar_select %p1458, %s28, 0
          %s1460 = sadd.s32 %s1459, %s1457
          %s1461 = smul.addr %s1460, 8
          %s1462 = scalar_lea.vmem %s5, %s1461
        $region80: #{model_forward.3} parent=71 // pred_fallthru
          _
        // Predicated region
        $region81: #{model_forward.3} parent=71 // pred_check
          %p1463 = pneg %p210
        $region82: #{model_forward.3} parent=71 // pred_check_branch
          %1465 = sbr.rel (%p1463) target = $region84
        $region83: #{model_forward.3} parent=71 // pred_region
          %p1466 = scmp.lt.s32.totalorder %s29, 2
          %s1467 = scalar_select %p1466, %s29, 2
          %p1468 = scmp.lt.s32.totalorder %s28, 0
          %s1469 = scalar_select %p1468, %s28, 0
          %s1470 = sadd.s32 %s1469, %s1467
          %s1471 = smul.addr %s1470, 8
          %s1472 = scalar_lea.vmem %s6, %s1471
        $region84: #{model_forward.3} parent=71 // pred_fallthru
          _
        // Predicated region
        $region85: #{model_forward.3} parent=71 // pred_check
          %p1473 = pneg %p238
        $region86: #{model_forward.3} parent=71 // pred_check_branch
          %1475 = sbr.rel (%p1473) target = $region88
        $region87: #{model_forward.3} parent=71 // pred_region
          %p1476 = scmp.lt.s32.totalorder %s29, 2
          %s1477 = scalar_select %p1476, %s29, 2
          %p1478 = scmp.lt.s32.totalorder %s28, 0
          %s1479 = scalar_select %p1478, %s28, 0
          %s1480 = sadd.s32 %s1479, %s1477
          %s1481 = smul.addr %s1480, 8
          %s1482 = scalar_lea.vmem %s7, %s1481
        $region88: #{model_forward.3} parent=71 // pred_fallthru
          _
        // Predicated region
        $region89: #{model_forward.3} parent=71 // pred_check
          %p1483 = pneg %p266
        $region90: #{model_forward.3} parent=71 // pred_check_branch
          %1485 = sbr.rel (%p1483) target = $region92
        $region91: #{model_forward.3} parent=71 // pred_region
          %p1486 = scmp.lt.s32.totalorder %s29, 2
          %s1487 = scalar_select %p1486, %s29, 2
          %p1488 = scmp.lt.s32.totalorder %s28, 0
          %s1489 = scalar_select %p1488, %s28, 0
          %s1490 = sadd.s32 %s1489, %s1487
          %s1491 = smul.addr %s1490, 8
          %s1492 = scalar_lea.vmem %s8, %s1491
        $region92: #{model_forward.3} parent=71 // pred_fallthru
          _
        // Predicated region
        $region93: #{model_forward.3} parent=71 // pred_check
          %p1493 = pneg %p294
        $region94: #{model_forward.3} parent=71 // pred_check_branch
          %1495 = sbr.rel (%p1493) target = $region96
        $region95: #{model_forward.3} parent=71 // pred_region
          %p1496 = scmp.lt.s32.totalorder %s29, 2
          %s1497 = scalar_select %p1496, %s29, 2
          %p1498 = scmp.lt.s32.totalorder %s28, 0
          %s1499 = scalar_select %p1498, %s28, 0
          %s1500 = sadd.s32 %s1499, %s1497
          %s1501 = smul.addr %s1500, 8
          %s1502 = scalar_lea.vmem %s9, %s1501
        $region96: #{model_forward.3} parent=71 // pred_fallthru
          _
      $region72: #{model_forward.3} parent=5 // pred_fallthru
        _
    $region6: #{model_forward.3} parent=1 // loop_footer
      %s21 = sadd.s32 1, %s17
    $region7: #{model_forward.3} parent=1 // loop_footer_branch
      %16 = sbr.rel target = $region3
    $region8: #{model_forward.3} parent=1 // loop_exit
      _
    %1503 = vsyncpa [#allocation7], 1
    %s1504 = scalar_lea.sflag [#allocation7], 1
    %1505 = vsyncpa %s1504, 1

</llo_original>
